<compile_context>
chip_gen: v6e
topology: v6e:2x2x1
jax: 0.10.0
libtpu: 0.0.40
codegen_flags: <defaults>
</compile_context>

<pallas_src>
import jax
import jax.numpy as jnp
from jax.experimental import pallas as pl
from jax.experimental.pallas import tpu as pltpu


# ---------------------------------------------------------------------------
# Fused kernel: conv1 (as 4 lane-dense matmuls) -> maxpool -> fc1 -> fc2
# One batch item per grid step; everything stays in VMEM/vregs.
# ---------------------------------------------------------------------------
def convnet_kernel(p00_ref, p01_ref, p10_ref, p11_ref,
                   wc_ref, bc_ref, w1_ref, b1_ref, w2_ref, b2_ref, o_ref):
    wc = wc_ref[...]                                          # (Cout, CKK) bf16

    def conv_slab(p_ref):                                     # (Cout, Hp*Wp) f32
        return jnp.dot(wc, p_ref[...], preferred_element_type=jnp.float32)

    # 2x2 max-pool over the four window-offset slabs (bias/ReLU commute with max)
    m = jnp.maximum(jnp.maximum(conv_slab(p00_ref), conv_slab(p01_ref)),
                    jnp.maximum(conv_slab(p10_ref), conv_slab(p11_ref)))
    pooled = jnp.maximum(m + bc_ref[...], 0.0)                # (Cout, Hp*Wp) f32

    # fc1 accumulated per input channel; w1_ref layout = (Cout, Hp*Wp, hidden)
    # so the PyTorch (C, H, W) flatten order is carried by the weights.
    h = b1_ref[...]                                           # (1, hidden) f32
    for c in range(pooled.shape[0]):
        h = h + jnp.dot(pooled[c:c + 1, :].astype(jnp.bfloat16), w1_ref[c],
                        preferred_element_type=jnp.float32)
    h = jnp.maximum(h, 0.0)

    # fc2; weights/bias pre-padded to 128 lanes -> unmasked full-lane store.
    o_ref[...] = jnp.dot(h.astype(jnp.bfloat16), w2_ref[...],
                         preferred_element_type=jnp.float32) + b2_ref[...]


# ---------------------------------------------------------------------------
# Host-side glue: im2col split into the four 2x2-pooling-offset slabs
# ---------------------------------------------------------------------------
def build_pool_slabs(x, kh, kw):
    """Returns 4 arrays of shape (N, C*kh*kw, Hp*Wp).

    Slab (dh, dw) holds im2col columns for conv-output pixels (2*ph+dh, 2*pw+dw);
    lane index = ph * Wp + pw, feature (row) order = (ci, ki, kj).
    """
    N, C, H, W = x.shape
    Ho, Wo = H - kh + 1, W - kw + 1
    Hp, Wp = Ho // 2, Wo // 2
    cols = []
    for ci in range(C):
        for ki in range(kh):
            for kj in range(kw):
                cols.append(x[:, ci, ki:ki + Ho, kj:kj + Wo])      # (N, Ho, Wo)
    s = jnp.stack(cols, axis=1)                                    # (N, CKK, Ho, Wo)
    return tuple(
        s[:, :, dh::2, dw::2].reshape(N, C * kh * kw, Hp * Wp)     # (N, CKK, Hp*Wp)
        for dh in (0, 1) for dw in (0, 1))


@jax.jit
def convnet_forward(x, params):
    conv_w, conv_b, fc1_w, fc1_b, fc2_w, fc2_b = params
    N, C, H, W = x.shape
    Cout, _, KH, KW = conv_w.shape
    Ho, Wo = H - KH + 1, W - KW + 1            # 28, 28
    Hp, Wp = Ho // 2, Wo // 2                  # 14, 14
    P = Hp * Wp                                # 196
    CKK = C * KH * KW                          # 75
    hidden = fc1_w.shape[0]                    # 84
    num_out = fc2_w.shape[0]                   # 10
    lanes = ((num_out + 127) // 128) * 128     # 128 (lane-dense fc2 output)

    # bf16 matmul operands; f32 accumulation happens inside the kernel.
    slabs = tuple(s.astype(jnp.bfloat16) for s in build_pool_slabs(x, KH, KW))
    wc = conv_w.reshape(Cout, CKK).astype(jnp.bfloat16)                # (6, 75)
    bc = conv_b.reshape(Cout, 1)                                       # (6, 1) f32
    w1 = (fc1_w.reshape(hidden, Cout, P).transpose(1, 2, 0)
          .astype(jnp.bfloat16))                                       # (6, 196, 84)
    b1 = fc1_b.reshape(1, hidden)                                      # (1, 84) f32
    w2 = jnp.zeros((hidden, lanes), jnp.bfloat16).at[:, :num_out].set(
        fc2_w.T.astype(jnp.bfloat16))                                  # (84, 128)
    b2 = jnp.zeros((1, lanes), jnp.float32).at[:, :num_out].set(
        fc2_b.reshape(1, num_out))                                     # (1, 128)

    slab_spec = pl.BlockSpec((None, CKK, P), lambda n: (n, 0, 0))
    const2 = lambda n: (0, 0)
    const3 = lambda n: (0, 0, 0)

    out = pl.pallas_call(
        convnet_kernel,
        out_shape=jax.ShapeDtypeStruct((N, 1, lanes), jnp.float32),
        grid=(N,),
        in_specs=[
            slab_spec, slab_spec, slab_spec, slab_spec,
            pl.BlockSpec((Cout, CKK), const2),
            pl.BlockSpec((Cout, 1), const2),
            pl.BlockSpec((Cout, P, hidden), const3),
            pl.BlockSpec((1, hidden), const2),
            pl.BlockSpec((hidden, lanes), const2),
            pl.BlockSpec((1, lanes), const2),
        ],
        out_specs=pl.BlockSpec((None, 1, lanes), lambda n: (n, 0, 0)),
        compiler_params=pltpu.CompilerParams(
            dimension_semantics=("parallel",)),
    )(*slabs, wc, bc, w1, b1, w2, b2)

    return out[:, 0, :num_out]


# ---------------------------------------------------------------------------
# Reference (independent path) with the same bf16-operand / f32-accumulate
# matmul policy, for a tight correctness check.
# ---------------------------------------------------------------------------
@jax.jit
def reference_forward(x, params):
    conv_w, conv_b, fc1_w, fc1_b, fc2_w, fc2_b = params
    y = jax.lax.conv_general_dilated(
        x.astype(jnp.bfloat16), conv_w.astype(jnp.bfloat16),
        window_strides=(1, 1), padding="VALID",
        dimension_numbers=("NCHW", "OIHW", "NCHW"),
        preferred_element_type=jnp.float32)
    y = jnp.maximum(y + conv_b.reshape(1, -1, 1, 1), 0.0)
    y = jax.lax.reduce_window(y, -jnp.inf, jax.lax.max,
                              (1, 1, 2, 2), (1, 1, 2, 2), "VALID")
    y = y.reshape(x.shape[0], -1)                    # torch flatten order (C,H,W)
    h = jnp.dot(y.astype(jnp.bfloat16), fc1_w.T.astype(jnp.bfloat16),
                preferred_element_type=jnp.float32) + fc1_b
    h = jnp.maximum(h, 0.0)
    return jnp.dot(h.astype(jnp.bfloat16), fc2_w.T.astype(jnp.bfloat16),
                   preferred_element_type=jnp.float32) + fc2_b


if __name__ == "__main__":
    key = jax.random.PRNGKey(0)
    kx, k1, k2, k3, k4, k5, k6 = jax.random.split(key, 7)

    N, C, H, W = 2, 3, 32, 32                 # fc1 expects 6*14*14 -> 32x32 input
    num_outputs = 10

    x = jax.random.normal(kx, (N, C, H, W), jnp.float32)

    # deterministic synthetic parameters in PyTorch layouts
    conv_w = 0.10 * jax.random.normal(k1, (6, C, 5, 5), jnp.float32)
    conv_b = 0.10 * jax.random.normal(k2, (6,), jnp.float32)
    fc1_w = 0.02 * jax.random.normal(k3, (84, 6 * 14 * 14), jnp.float32)
    fc1_b = 0.02 * jax.random.normal(k4, (84,), jnp.float32)
    fc2_w = 0.10 * jax.random.normal(k5, (num_outputs, 84), jnp.float32)
    fc2_b = 0.10 * jax.random.normal(k6, (num_outputs,), jnp.float32)
    params = (conv_w, conv_b, fc1_w, fc1_b, fc2_w, fc2_b)

    out = jax.block_until_ready(convnet_forward(x, params))
    ref = jax.block_until_ready(reference_forward(x, params))

    assert out.shape == (N, num_outputs), out.shape
    max_err = float(jnp.max(jnp.abs(out - ref)))
    assert jnp.allclose(out, ref, atol=5e-3, rtol=5e-3), (
        "mismatch vs reference: max abs err = %g" % max_err)

    print("KERNEL_OK")
</pallas_src>

<mosaic_0001>
module attributes {stable_mosaic.version = 11 : i64} {
  func.func @convnet_kernel(%arg0: i32, %arg1: memref<1x75x196xbf16, #tpu.memory_space<vmem>>, %arg2: memref<1x75x196xbf16, #tpu.memory_space<vmem>>, %arg3: memref<1x75x196xbf16, #tpu.memory_space<vmem>>, %arg4: memref<1x75x196xbf16, #tpu.memory_space<vmem>>, %arg5: memref<6x75xbf16, #tpu.memory_space<vmem>>, %arg6: memref<6x1xf32, #tpu.memory_space<vmem>>, %arg7: memref<6x196x84xbf16, #tpu.memory_space<vmem>>, %arg8: memref<1x84xf32, #tpu.memory_space<vmem>>, %arg9: memref<84x128xbf16, #tpu.memory_space<vmem>>, %arg10: memref<1x128xf32, #tpu.memory_space<vmem>>, %arg11: memref<1x1x128xf32, #tpu.memory_space<vmem>>) attributes {dimension_semantics = [#tpu.dimension_semantics<parallel>], iteration_bounds = array<i64: 2>, scalar_prefetch = 0 : i64, scratch_operands = 0 : i64, tpu.core_type = #tpu.core_type<tc>, window_params = [{transform_indices = @transform_0, window_bounds = array<i64: 1, 75, 196>}, {transform_indices = @transform_1, window_bounds = array<i64: 1, 75, 196>}, {transform_indices = @transform_2, window_bounds = array<i64: 1, 75, 196>}, {transform_indices = @transform_3, window_bounds = array<i64: 1, 75, 196>}, {pipeline_mode = #tpu.pipeline_mode<synchronous>, transform_indices = @transform_4, window_bounds = array<i64: 6, 75>}, {pipeline_mode = #tpu.pipeline_mode<synchronous>, transform_indices = @transform_5, window_bounds = array<i64: 6, 1>}, {pipeline_mode = #tpu.pipeline_mode<synchronous>, transform_indices = @transform_6, window_bounds = array<i64: 6, 196, 84>}, {pipeline_mode = #tpu.pipeline_mode<synchronous>, transform_indices = @transform_7, window_bounds = array<i64: 1, 84>}, {pipeline_mode = #tpu.pipeline_mode<synchronous>, transform_indices = @transform_8, window_bounds = array<i64: 84, 128>}, {pipeline_mode = #tpu.pipeline_mode<synchronous>, transform_indices = @transform_9, window_bounds = array<i64: 1, 128>}, {transform_indices = @transform_10, window_bounds = array<i64: 1, 1, 128>}]} {
    %c0 = arith.constant 0 : index
    %c0_0 = arith.constant 0 : index
    %0 = vector.load %arg5[%c0, %c0_0] : memref<6x75xbf16, #tpu.memory_space<vmem>>, vector<6x75xbf16>
    %c0_1 = arith.constant 0 : index
    %c0_2 = arith.constant 0 : index
    %c0_3 = arith.constant 0 : index
    %1 = vector.load %arg1[%c0_1, %c0_2, %c0_3] : memref<1x75x196xbf16, #tpu.memory_space<vmem>>, vector<1x75x196xbf16>
    %2 = vector.shape_cast %1 : vector<1x75x196xbf16> to vector<75x196xbf16>
    %cst = arith.constant dense<0.000000e+00> : vector<6x196xf32>
    %3 = tpu.matmul %0, %2, %cst {dimension_numbers = #tpu.dot_dimension_numbers<[1], [0], [0], [1], [0, 0, 1, 1], [], []>} : vector<6x75xbf16>, vector<75x196xbf16>, vector<6x196xf32> -> vector<6x196xf32>
    %c0_4 = arith.constant 0 : index
    %c0_5 = arith.constant 0 : index
    %c0_6 = arith.constant 0 : index
    %4 = vector.load %arg2[%c0_4, %c0_5, %c0_6] : memref<1x75x196xbf16, #tpu.memory_space<vmem>>, vector<1x75x196xbf16>
    %5 = vector.shape_cast %4 : vector<1x75x196xbf16> to vector<75x196xbf16>
    %cst_7 = arith.constant dense<0.000000e+00> : vector<6x196xf32>
    %6 = tpu.matmul %0, %5, %cst_7 {dimension_numbers = #tpu.dot_dimension_numbers<[1], [0], [0], [1], [0, 0, 1, 1], [], []>} : vector<6x75xbf16>, vector<75x196xbf16>, vector<6x196xf32> -> vector<6x196xf32>
    %7 = arith.maximumf %3, %6 : vector<6x196xf32>
    %c0_8 = arith.constant 0 : index
    %c0_9 = arith.constant 0 : index
    %c0_10 = arith.constant 0 : index
    %8 = vector.load %arg3[%c0_8, %c0_9, %c0_10] : memref<1x75x196xbf16, #tpu.memory_space<vmem>>, vector<1x75x196xbf16>
    %9 = vector.shape_cast %8 : vector<1x75x196xbf16> to vector<75x196xbf16>
    %cst_11 = arith.constant dense<0.000000e+00> : vector<6x196xf32>
    %10 = tpu.matmul %0, %9, %cst_11 {dimension_numbers = #tpu.dot_dimension_numbers<[1], [0], [0], [1], [0, 0, 1, 1], [], []>} : vector<6x75xbf16>, vector<75x196xbf16>, vector<6x196xf32> -> vector<6x196xf32>
    %c0_12 = arith.constant 0 : index
    %c0_13 = arith.constant 0 : index
    %c0_14 = arith.constant 0 : index
    %11 = vector.load %arg4[%c0_12, %c0_13, %c0_14] : memref<1x75x196xbf16, #tpu.memory_space<vmem>>, vector<1x75x196xbf16>
    %12 = vector.shape_cast %11 : vector<1x75x196xbf16> to vector<75x196xbf16>
    %cst_15 = arith.constant dense<0.000000e+00> : vector<6x196xf32>
    %13 = tpu.matmul %0, %12, %cst_15 {dimension_numbers = #tpu.dot_dimension_numbers<[1], [0], [0], [1], [0, 0, 1, 1], [], []>} : vector<6x75xbf16>, vector<75x196xbf16>, vector<6x196xf32> -> vector<6x196xf32>
    %14 = arith.maximumf %10, %13 : vector<6x196xf32>
    %15 = arith.maximumf %7, %14 : vector<6x196xf32>
    %c0_16 = arith.constant 0 : index
    %c0_17 = arith.constant 0 : index
    %16 = vector.load %arg6[%c0_16, %c0_17] : memref<6x1xf32, #tpu.memory_space<vmem>>, vector<6x1xf32>
    %17 = vector.broadcast %16 : vector<6x1xf32> to vector<6x196xf32>
    %18 = arith.addf %15, %17 : vector<6x196xf32>
    %cst_18 = arith.constant 0.000000e+00 : f32
    %19 = vector.broadcast %cst_18 : f32 to vector<6x196xf32>
    %20 = arith.maximumf %18, %19 : vector<6x196xf32>
    %c0_19 = arith.constant 0 : index
    %c0_20 = arith.constant 0 : index
    %21 = vector.load %arg8[%c0_19, %c0_20] : memref<1x84xf32, #tpu.memory_space<vmem>>, vector<1x84xf32>
    %22 = vector.extract_strided_slice %20 {offsets = [0, 0], sizes = [1, 196], strides = [1, 1]} : vector<6x196xf32> to vector<1x196xf32>
    %23 = arith.truncf %22 : vector<1x196xf32> to vector<1x196xbf16>
    %c0_21 = arith.constant 0 : index
    %c0_22 = arith.constant 0 : index
    %c0_23 = arith.constant 0 : index
    %24 = vector.load %arg7[%c0_21, %c0_22, %c0_23] : memref<6x196x84xbf16, #tpu.memory_space<vmem>>, vector<1x196x84xbf16>
    %25 = vector.shape_cast %24 : vector<1x196x84xbf16> to vector<196x84xbf16>
    %cst_24 = arith.constant dense<0.000000e+00> : vector<1x84xf32>
    %26 = tpu.matmul %23, %25, %cst_24 {dimension_numbers = #tpu.dot_dimension_numbers<[1], [0], [0], [1], [0, 0, 1, 1], [], []>} : vector<1x196xbf16>, vector<196x84xbf16>, vector<1x84xf32> -> vector<1x84xf32>
    %27 = arith.addf %21, %26 : vector<1x84xf32>
    %28 = vector.extract_strided_slice %20 {offsets = [1, 0], sizes = [1, 196], strides = [1, 1]} : vector<6x196xf32> to vector<1x196xf32>
    %29 = arith.truncf %28 : vector<1x196xf32> to vector<1x196xbf16>
    %c1 = arith.constant 1 : index
    %c0_25 = arith.constant 0 : index
    %c0_26 = arith.constant 0 : index
    %30 = vector.load %arg7[%c1, %c0_25, %c0_26] : memref<6x196x84xbf16, #tpu.memory_space<vmem>>, vector<1x196x84xbf16>
    %31 = vector.shape_cast %30 : vector<1x196x84xbf16> to vector<196x84xbf16>
    %cst_27 = arith.constant dense<0.000000e+00> : vector<1x84xf32>
    %32 = tpu.matmul %29, %31, %cst_27 {dimension_numbers = #tpu.dot_dimension_numbers<[1], [0], [0], [1], [0, 0, 1, 1], [], []>} : vector<1x196xbf16>, vector<196x84xbf16>, vector<1x84xf32> -> vector<1x84xf32>
    %33 = arith.addf %27, %32 : vector<1x84xf32>
    %34 = vector.extract_strided_slice %20 {offsets = [2, 0], sizes = [1, 196], strides = [1, 1]} : vector<6x196xf32> to vector<1x196xf32>
    %35 = arith.truncf %34 : vector<1x196xf32> to vector<1x196xbf16>
    %c2 = arith.constant 2 : index
    %c0_28 = arith.constant 0 : index
    %c0_29 = arith.constant 0 : index
    %36 = vector.load %arg7[%c2, %c0_28, %c0_29] : memref<6x196x84xbf16, #tpu.memory_space<vmem>>, vector<1x196x84xbf16>
    %37 = vector.shape_cast %36 : vector<1x196x84xbf16> to vector<196x84xbf16>
    %cst_30 = arith.constant dense<0.000000e+00> : vector<1x84xf32>
    %38 = tpu.matmul %35, %37, %cst_30 {dimension_numbers = #tpu.dot_dimension_numbers<[1], [0], [0], [1], [0, 0, 1, 1], [], []>} : vector<1x196xbf16>, vector<196x84xbf16>, vector<1x84xf32> -> vector<1x84xf32>
    %39 = arith.addf %33, %38 : vector<1x84xf32>
    %40 = vector.extract_strided_slice %20 {offsets = [3, 0], sizes = [1, 196], strides = [1, 1]} : vector<6x196xf32> to vector<1x196xf32>
    %41 = arith.truncf %40 : vector<1x196xf32> to vector<1x196xbf16>
    %c3 = arith.constant 3 : index
    %c0_31 = arith.constant 0 : index
    %c0_32 = arith.constant 0 : index
    %42 = vector.load %arg7[%c3, %c0_31, %c0_32] : memref<6x196x84xbf16, #tpu.memory_space<vmem>>, vector<1x196x84xbf16>
    %43 = vector.shape_cast %42 : vector<1x196x84xbf16> to vector<196x84xbf16>
    %cst_33 = arith.constant dense<0.000000e+00> : vector<1x84xf32>
    %44 = tpu.matmul %41, %43, %cst_33 {dimension_numbers = #tpu.dot_dimension_numbers<[1], [0], [0], [1], [0, 0, 1, 1], [], []>} : vector<1x196xbf16>, vector<196x84xbf16>, vector<1x84xf32> -> vector<1x84xf32>
    %45 = arith.addf %39, %44 : vector<1x84xf32>
    %46 = vector.extract_strided_slice %20 {offsets = [4, 0], sizes = [1, 196], strides = [1, 1]} : vector<6x196xf32> to vector<1x196xf32>
    %47 = arith.truncf %46 : vector<1x196xf32> to vector<1x196xbf16>
    %c4 = arith.constant 4 : index
    %c0_34 = arith.constant 0 : index
    %c0_35 = arith.constant 0 : index
    %48 = vector.load %arg7[%c4, %c0_34, %c0_35] : memref<6x196x84xbf16, #tpu.memory_space<vmem>>, vector<1x196x84xbf16>
    %49 = vector.shape_cast %48 : vector<1x196x84xbf16> to vector<196x84xbf16>
    %cst_36 = arith.constant dense<0.000000e+00> : vector<1x84xf32>
    %50 = tpu.matmul %47, %49, %cst_36 {dimension_numbers = #tpu.dot_dimension_numbers<[1], [0], [0], [1], [0, 0, 1, 1], [], []>} : vector<1x196xbf16>, vector<196x84xbf16>, vector<1x84xf32> -> vector<1x84xf32>
    %51 = arith.addf %45, %50 : vector<1x84xf32>
    %52 = vector.extract_strided_slice %20 {offsets = [5, 0], sizes = [1, 196], strides = [1, 1]} : vector<6x196xf32> to vector<1x196xf32>
    %53 = arith.truncf %52 : vector<1x196xf32> to vector<1x196xbf16>
    %c5 = arith.constant 5 : index
    %c0_37 = arith.constant 0 : index
    %c0_38 = arith.constant 0 : index
    %54 = vector.load %arg7[%c5, %c0_37, %c0_38] : memref<6x196x84xbf16, #tpu.memory_space<vmem>>, vector<1x196x84xbf16>
    %55 = vector.shape_cast %54 : vector<1x196x84xbf16> to vector<196x84xbf16>
    %cst_39 = arith.constant dense<0.000000e+00> : vector<1x84xf32>
    %56 = tpu.matmul %53, %55, %cst_39 {dimension_numbers = #tpu.dot_dimension_numbers<[1], [0], [0], [1], [0, 0, 1, 1], [], []>} : vector<1x196xbf16>, vector<196x84xbf16>, vector<1x84xf32> -> vector<1x84xf32>
    %57 = arith.addf %51, %56 : vector<1x84xf32>
    %cst_40 = arith.constant 0.000000e+00 : f32
    %58 = vector.broadcast %cst_40 : f32 to vector<1x84xf32>
    %59 = arith.maximumf %57, %58 : vector<1x84xf32>
    %60 = arith.truncf %59 : vector<1x84xf32> to vector<1x84xbf16>
    %c0_41 = arith.constant 0 : index
    %c0_42 = arith.constant 0 : index
    %61 = vector.load %arg9[%c0_41, %c0_42] : memref<84x128xbf16, #tpu.memory_space<vmem>>, vector<84x128xbf16>
    %cst_43 = arith.constant dense<0.000000e+00> : vector<1x128xf32>
    %62 = tpu.matmul %60, %61, %cst_43 {dimension_numbers = #tpu.dot_dimension_numbers<[1], [0], [0], [1], [0, 0, 1, 1], [], []>} : vector<1x84xbf16>, vector<84x128xbf16>, vector<1x128xf32> -> vector<1x128xf32>
    %c0_44 = arith.constant 0 : index
    %c0_45 = arith.constant 0 : index
    %63 = vector.load %arg10[%c0_44, %c0_45] : memref<1x128xf32, #tpu.memory_space<vmem>>, vector<1x128xf32>
    %64 = arith.addf %62, %63 : vector<1x128xf32>
    %c0_46 = arith.constant 0 : index
    %c0_47 = arith.constant 0 : index
    %c0_48 = arith.constant 0 : index
    %65 = vector.load %arg11[%c0_46, %c0_47, %c0_48] : memref<1x1x128xf32, #tpu.memory_space<vmem>>, vector<1x1x128xf32>
    %66 = vector.shape_cast %65 : vector<1x1x128xf32> to vector<1x128xf32>
    %67 = vector.shape_cast %64 : vector<1x128xf32> to vector<1x1x128xf32>
    tpu.vector_store %arg11[%c0_46, %c0_47, %c0_48], %67 {strides = array<i32>} : memref<1x1x128xf32, #tpu.memory_space<vmem>>, vector<1x1x128xf32>,
    return
  }
  func.func @transform_0(%arg0: i32) -> (i32, i32, i32) {
    %c0_i32 = arith.constant 0 : i32
    %c0_i32_0 = arith.constant 0 : i32
    %c0_i32_1 = arith.constant 0 : i32
    return %arg0, %c0_i32, %c0_i32_0 : i32, i32, i32
  }
  func.func @transform_1(%arg0: i32) -> (i32, i32, i32) {
    %c0_i32 = arith.constant 0 : i32
    %c0_i32_0 = arith.constant 0 : i32
    %c0_i32_1 = arith.constant 0 : i32
    return %arg0, %c0_i32, %c0_i32_0 : i32, i32, i32
  }
  func.func @transform_2(%arg0: i32) -> (i32, i32, i32) {
    %c0_i32 = arith.constant 0 : i32
    %c0_i32_0 = arith.constant 0 : i32
    %c0_i32_1 = arith.constant 0 : i32
    return %arg0, %c0_i32, %c0_i32_0 : i32, i32, i32
  }
  func.func @transform_3(%arg0: i32) -> (i32, i32, i32) {
    %c0_i32 = arith.constant 0 : i32
    %c0_i32_0 = arith.constant 0 : i32
    %c0_i32_1 = arith.constant 0 : i32
    return %arg0, %c0_i32, %c0_i32_0 : i32, i32, i32
  }
  func.func @transform_4(%arg0: i32) -> (i32, i32) {
    %c0_i32 = arith.constant 0 : i32
    %c0_i32_0 = arith.constant 0 : i32
    %c0_i32_1 = arith.constant 0 : i32
    return %c0_i32, %c0_i32_0 : i32, i32
  }
  func.func @transform_5(%arg0: i32) -> (i32, i32) {
    %c0_i32 = arith.constant 0 : i32
    %c0_i32_0 = arith.constant 0 : i32
    %c0_i32_1 = arith.constant 0 : i32
    return %c0_i32, %c0_i32_0 : i32, i32
  }
  func.func @transform_6(%arg0: i32) -> (i32, i32, i32) {
    %c0_i32 = arith.constant 0 : i32
    %c0_i32_0 = arith.constant 0 : i32
    %c0_i32_1 = arith.constant 0 : i32
    %c0_i32_2 = arith.constant 0 : i32
    return %c0_i32, %c0_i32_0, %c0_i32_1 : i32, i32, i32
  }
  func.func @transform_7(%arg0: i32) -> (i32, i32) {
    %c0_i32 = arith.constant 0 : i32
    %c0_i32_0 = arith.constant 0 : i32
    %c0_i32_1 = arith.constant 0 : i32
    return %c0_i32, %c0_i32_0 : i32, i32
  }
  func.func @transform_8(%arg0: i32) -> (i32, i32) {
    %c0_i32 = arith.constant 0 : i32
    %c0_i32_0 = arith.constant 0 : i32
    %c0_i32_1 = arith.constant 0 : i32
    return %c0_i32, %c0_i32_0 : i32, i32
  }
  func.func @transform_9(%arg0: i32) -> (i32, i32) {
    %c0_i32 = arith.constant 0 : i32
    %c0_i32_0 = arith.constant 0 : i32
    %c0_i32_1 = arith.constant 0 : i32
    return %c0_i32, %c0_i32_0 : i32, i32
  }
  func.func @transform_10(%arg0: i32) -> (i32, i32, i32) {
    %c0_i32 = arith.constant 0 : i32
    %c0_i32_0 = arith.constant 0 : i32
    %c0_i32_1 = arith.constant 0 : i32
    return %arg0, %c0_i32, %c0_i32_0 : i32, i32, i32
  }
}

</mosaic_0001>

<llo_original>
// kernel: convnet_forward.1
$region0: #{convnet_forward.1}
  #allocation0 [shape = 'u32[]', space=smem, size = 0x4, offset = 0x4, fixed_abs, tag = 'smem constant byte address 0x4 - core index']
  #allocation1 [shape = 'u32[144,128]{1,0:T(1,128)}', space=vmem, size = 0x12000, scoped, tag = 'internal scratch']
  %s0 = inlined_call_operand.vmem [shape: bf16[2,75,196], index: 0, kind: input, shape index: {}]
  %s1 = inlined_call_operand.vmem [shape: bf16[2,75,196], index: 1, kind: input, shape index: {}]
  %s2 = inlined_call_operand.vmem [shape: bf16[2,75,196], index: 2, kind: input, shape index: {}]
  %s3 = inlined_call_operand.vmem [shape: bf16[2,75,196], index: 3, kind: input, shape index: {}]
  %s4 = inlined_call_operand.vmem [shape: bf16[6,75], index: 4, kind: input, shape index: {}]
  %s5 = inlined_call_operand.vmem [shape: f32[6,1], index: 5, kind: input, shape index: {}]
  %s6 = inlined_call_operand.vmem [shape: bf16[6,196,84], index: 6, kind: input, shape index: {}]
  %s7 = inlined_call_operand.vmem [shape: f32[1,84], index: 7, kind: input, shape index: {}]
  %s8 = inlined_call_operand.vmem [shape: bf16[84,128], index: 8, kind: input, shape index: {}]
  %s9 = inlined_call_operand.vmem [shape: f32[1,128], index: 9, kind: input, shape index: {}]
  %s10 = inlined_call_operand.hbm [shape: f32[2,1,128], index: 10, kind: output, shape index: {}]
  %s11 = sld [smem:[#allocation0]]
  $region73: #{convnet_forward.1} parent=0
    _
  %s13 = ssub.s32 1, %s11
  %s14 = scalar_select 0, %s13, %s11
  $region1: #{convnet_forward.1} parent=0
    #allocation2 [shape = 'u8[1024]{0}', space=vmem, size = 0x400, scoped, tag = 'output window, operand 0']
    #allocation3 [shape = 's32[2]{0}', space=sflag, size = 0x8, scoped, tag = 'scoped memory for convnet_forward.1']
    %15 = vsyncpa [#allocation3], 0
    %s16 = scalar_lea.sflag [#allocation3], 1
    %17 = vsyncpa %s16, 0
    loop: start=0, step=1, limit=4
    $region2: #{convnet_forward.1} parent=1 // loop_pre_header
      _
    $region3: #{convnet_forward.1} parent=1 // loop_header
      %s19 = sphi 0, %s23
      %p20 = scmp.ge.s32.totalorder %s19, 4
      %s29 = sphi 0, %s31
      %s32 = sphi 0, %s29
      %s33 = sphi 0, %s32
      %s49 = sphi 0, %s33
      %s55 = sphi 0, %s57
      %s58 = sphi 0, %s55
      %s59 = sphi 0, %s58
      %s75 = sphi 0, %s59
      %s81 = sphi 0, %s83
      %s84 = sphi 0, %s81
      %s85 = sphi 0, %s84
      %s101 = sphi 0, %s85
      %s107 = sphi 0, %s109
      %s110 = sphi 0, %s107
      %s111 = sphi 0, %s110
      %s127 = sphi 0, %s111
      %s131 = sphi 0, %s131
      %s133 = sphi 0, %s131
      %s134 = sphi 0, %s133
      %s148 = sphi 0, %s134
      %s152 = sphi 0, %s152
      %s154 = sphi 0, %s152
      %s155 = sphi 0, %s154
      %s169 = sphi 0, %s155
      %s173 = sphi 0, %s173
      %s175 = sphi 0, %s173
      %s176 = sphi 0, %s175
      %s190 = sphi 0, %s176
      %s194 = sphi 0, %s194
      %s196 = sphi 0, %s194
      %s197 = sphi 0, %s196
      %s211 = sphi 0, %s197
      %s215 = sphi 0, %s215
      %s217 = sphi 0, %s215
      %s218 = sphi 0, %s217
      %s232 = sphi 0, %s218
      %s236 = sphi 0, %s236
      %s238 = sphi 0, %s236
      %s239 = sphi 0, %s238
      %s253 = sphi 0, %s239
      %s259 = sphi 0, %s261
      %s262 = sphi 0, %s259
      %s263 = sphi 0, %s262
      %s279 = sphi 0, %s263
    $region4: #{convnet_forward.1} parent=1 // loop_header_branch
      %22 = sbr.rel (%p20) target = $region8
    $region5: #{convnet_forward.1} parent=1 // loop_body
      %s24 = ssub.s32 %s19, 1
      %s25 = ssub.s32 %s19, 2
      %s26 = sadd.s32 %s19, 1
      %s27 = ssub.s32 %s19, %s26
      %p28 = scmp.eq.s32.totalorder %s27, 0
      %s30 = sadd.s32 %s29, 1
      %s31 = scalar_select %p28, %s29, %s30
      %p34 = pneg %p28
      %p35 = scmp.eq.s32.totalorder %s19, 1
      %p36 = por %p34, %p35
      %p37 = scmp.ne.s32.totalorder %s29, %s32
      %p38 = scmp.eq.s32.totalorder %s19, 0
      %p39 = por %p37, %p38
      %p40 = scmp.ne.s32.totalorder %s29, %s32
      %p41 = scmp.eq.s32.totalorder %s24, 1
      %p42 = por %p40, %p41
      %p43 = scmp.ne.s32.totalorder %s32, %s33
      %p44 = scmp.eq.s32.totalorder %s24, 0
      %p45 = por %p43, %p44
      %p46 = scmp.ne.s32.totalorder %s32, %s33
      %p47 = scmp.eq.s32.totalorder %s25, 1
      %p48 = por %p46, %p47
      %p50 = scmp.ne.s32.totalorder %s33, %s49
      %p51 = scmp.eq.s32.totalorder %s25, 0
      %p52 = por %p50, %p51
      %s53 = ssub.s32 %s19, %s26
      %p54 = scmp.eq.s32.totalorder %s53, 0
      %s56 = sadd.s32 %s55, 1
      %s57 = scalar_select %p54, %s55, %s56
      %p60 = pneg %p54
      %p61 = scmp.eq.s32.totalorder %s19, 1
      %p62 = por %p60, %p61
      %p63 = scmp.ne.s32.totalorder %s55, %s58
      %p64 = scmp.eq.s32.totalorder %s19, 0
      %p65 = por %p63, %p64
      %p66 = scmp.ne.s32.totalorder %s55, %s58
      %p67 = scmp.eq.s32.totalorder %s24, 1
      %p68 = por %p66, %p67
      %p69 = scmp.ne.s32.totalorder %s58, %s59
      %p70 = scmp.eq.s32.totalorder %s24, 0
      %p71 = por %p69, %p70
      %p72 = scmp.ne.s32.totalorder %s58, %s59
      %p73 = scmp.eq.s32.totalorder %s25, 1
      %p74 = por %p72, %p73
      %p76 = scmp.ne.s32.totalorder %s59, %s75
      %p77 = scmp.eq.s32.totalorder %s25, 0
      %p78 = por %p76, %p77
      %s79 = ssub.s32 %s19, %s26
      %p80 = scmp.eq.s32.totalorder %s79, 0
      %s82 = sadd.s32 %s81, 1
      %s83 = scalar_select %p80, %s81, %s82
      %p86 = pneg %p80
      %p87 = scmp.eq.s32.totalorder %s19, 1
      %p88 = por %p86, %p87
      %p89 = scmp.ne.s32.totalorder %s81, %s84
      %p90 = scmp.eq.s32.totalorder %s19, 0
      %p91 = por %p89, %p90
      %p92 = scmp.ne.s32.totalorder %s81, %s84
      %p93 = scmp.eq.s32.totalorder %s24, 1
      %p94 = por %p92, %p93
      %p95 = scmp.ne.s32.totalorder %s84, %s85
      %p96 = scmp.eq.s32.totalorder %s24, 0
      %p97 = por %p95, %p96
      %p98 = scmp.ne.s32.totalorder %s84, %s85
      %p99 = scmp.eq.s32.totalorder %s25, 1
      %p100 = por %p98, %p99
      %p102 = scmp.ne.s32.totalorder %s85, %s101
      %p103 = scmp.eq.s32.totalorder %s25, 0
      %p104 = por %p102, %p103
      %s105 = ssub.s32 %s19, %s26
      %p106 = scmp.eq.s32.totalorder %s105, 0
      %s108 = sadd.s32 %s107, 1
      %s109 = scalar_select %p106, %s107, %s108
      %p112 = pneg %p106
      %p113 = scmp.eq.s32.totalorder %s19, 1
      %p114 = por %p112, %p113
      %p115 = scmp.ne.s32.totalorder %s107, %s110
      %p116 = scmp.eq.s32.totalorder %s19, 0
      %p117 = por %p115, %p116
      %p118 = scmp.ne.s32.totalorder %s107, %s110
      %p119 = scmp.eq.s32.totalorder %s24, 1
      %p120 = por %p118, %p119
      %p121 = scmp.ne.s32.totalorder %s110, %s111
      %p122 = scmp.eq.s32.totalorder %s24, 0
      %p123 = por %p121, %p122
      %p124 = scmp.ne.s32.totalorder %s110, %s111
      %p125 = scmp.eq.s32.totalorder %s25, 1
      %p126 = por %p124, %p125
      %p128 = scmp.ne.s32.totalorder %s111, %s127
      %p129 = scmp.eq.s32.totalorder %s25, 0
      %p130 = por %p128, %p129
      %s132 = sadd.s32 %s131, 1
      %p135 = scmp.eq.s32.totalorder %s19, 1
      %p136 = scmp.ne.s32.totalorder %s131, %s133
      %p137 = scmp.eq.s32.totalorder %s19, 0
      %p138 = por %p136, %p137
      %p139 = scmp.ne.s32.totalorder %s131, %s133
      %p140 = scmp.eq.s32.totalorder %s24, 1
      %p141 = por %p139, %p140
      %p142 = scmp.ne.s32.totalorder %s133, %s134
      %p143 = scmp.eq.s32.totalorder %s24, 0
      %p144 = por %p142, %p143
      %p145 = scmp.ne.s32.totalorder %s133, %s134
      %p146 = scmp.eq.s32.totalorder %s25, 1
      %p147 = por %p145, %p146
      %p149 = scmp.ne.s32.totalorder %s134, %s148
      %p150 = scmp.eq.s32.totalorder %s25, 0
      %p151 = por %p149, %p150
      %s153 = sadd.s32 %s152, 1
      %p156 = scmp.eq.s32.totalorder %s19, 1
      %p157 = scmp.ne.s32.totalorder %s152, %s154
      %p158 = scmp.eq.s32.totalorder %s19, 0
      %p159 = por %p157, %p158
      %p160 = scmp.ne.s32.totalorder %s152, %s154
      %p161 = scmp.eq.s32.totalorder %s24, 1
      %p162 = por %p160, %p161
      %p163 = scmp.ne.s32.totalorder %s154, %s155
      %p164 = scmp.eq.s32.totalorder %s24, 0
      %p165 = por %p163, %p164
      %p166 = scmp.ne.s32.totalorder %s154, %s155
      %p167 = scmp.eq.s32.totalorder %s25, 1
      %p168 = por %p166, %p167
      %p170 = scmp.ne.s32.totalorder %s155, %s169
      %p171 = scmp.eq.s32.totalorder %s25, 0
      %p172 = por %p170, %p171
      %s174 = sadd.s32 %s173, 1
      %p177 = scmp.eq.s32.totalorder %s19, 1
      %p178 = scmp.ne.s32.totalorder %s173, %s175
      %p179 = scmp.eq.s32.totalorder %s19, 0
      %p180 = por %p178, %p179
      %p181 = scmp.ne.s32.totalorder %s173, %s175
      %p182 = scmp.eq.s32.totalorder %s24, 1
      %p183 = por %p181, %p182
      %p184 = scmp.ne.s32.totalorder %s175, %s176
      %p185 = scmp.eq.s32.totalorder %s24, 0
      %p186 = por %p184, %p185
      %p187 = scmp.ne.s32.totalorder %s175, %s176
      %p188 = scmp.eq.s32.totalorder %s25, 1
      %p189 = por %p187, %p188
      %p191 = scmp.ne.s32.totalorder %s176, %s190
      %p192 = scmp.eq.s32.totalorder %s25, 0
      %p193 = por %p191, %p192
      %s195 = sadd.s32 %s194, 1
      %p198 = scmp.eq.s32.totalorder %s19, 1
      %p199 = scmp.ne.s32.totalorder %s194, %s196
      %p200 = scmp.eq.s32.totalorder %s19, 0
      %p201 = por %p199, %p200
      %p202 = scmp.ne.s32.totalorder %s194, %s196
      %p203 = scmp.eq.s32.totalorder %s24, 1
      %p204 = por %p202, %p203
      %p205 = scmp.ne.s32.totalorder %s196, %s197
      %p206 = scmp.eq.s32.totalorder %s24, 0
      %p207 = por %p205, %p206
      %p208 = scmp.ne.s32.totalorder %s196, %s197
      %p209 = scmp.eq.s32.totalorder %s25, 1
      %p210 = por %p208, %p209
      %p212 = scmp.ne.s32.totalorder %s197, %s211
      %p213 = scmp.eq.s32.totalorder %s25, 0
      %p214 = por %p212, %p213
      %s216 = sadd.s32 %s215, 1
      %p219 = scmp.eq.s32.totalorder %s19, 1
      %p220 = scmp.ne.s32.totalorder %s215, %s217
      %p221 = scmp.eq.s32.totalorder %s19, 0
      %p222 = por %p220, %p221
      %p223 = scmp.ne.s32.totalorder %s215, %s217
      %p224 = scmp.eq.s32.totalorder %s24, 1
      %p225 = por %p223, %p224
      %p226 = scmp.ne.s32.totalorder %s217, %s218
      %p227 = scmp.eq.s32.totalorder %s24, 0
      %p228 = por %p226, %p227
      %p229 = scmp.ne.s32.totalorder %s217, %s218
      %p230 = scmp.eq.s32.totalorder %s25, 1
      %p231 = por %p229, %p230
      %p233 = scmp.ne.s32.totalorder %s218, %s232
      %p234 = scmp.eq.s32.totalorder %s25, 0
      %p235 = por %p233, %p234
      %s237 = sadd.s32 %s236, 1
      %p240 = scmp.eq.s32.totalorder %s19, 1
      %p241 = scmp.ne.s32.totalorder %s236, %s238
      %p242 = scmp.eq.s32.totalorder %s19, 0
      %p243 = por %p241, %p242
      %p244 = scmp.ne.s32.totalorder %s236, %s238
      %p245 = scmp.eq.s32.totalorder %s24, 1
      %p246 = por %p244, %p245
      %p247 = scmp.ne.s32.totalorder %s238, %s239
      %p248 = scmp.eq.s32.totalorder %s24, 0
      %p249 = por %p247, %p248
      %p250 = scmp.ne.s32.totalorder %s238, %s239
      %p251 = scmp.eq.s32.totalorder %s25, 1
      %p252 = por %p250, %p251
      %p254 = scmp.ne.s32.totalorder %s239, %s253
      %p255 = scmp.eq.s32.totalorder %s25, 0
      %p256 = por %p254, %p255
      %s257 = ssub.s32 %s19, %s26
      %p258 = scmp.eq.s32.totalorder %s257, 0
      %s260 = sadd.s32 %s259, 1
      %s261 = scalar_select %p258, %s259, %s260
      %p264 = pneg %p258
      %p265 = scmp.eq.s32.totalorder %s19, 1
      %p266 = por %p264, %p265
      %p267 = scmp.ne.s32.totalorder %s259, %s262
      %p268 = scmp.eq.s32.totalorder %s19, 0
      %p269 = por %p267, %p268
      %p270 = scmp.ne.s32.totalorder %s259, %s262
      %p271 = scmp.eq.s32.totalorder %s24, 1
      %p272 = por %p270, %p271
      %p273 = scmp.ne.s32.totalorder %s262, %s263
      %p274 = scmp.eq.s32.totalorder %s24, 0
      %p275 = por %p273, %p274
      %p276 = scmp.ne.s32.totalorder %s262, %s263
      %p277 = scmp.eq.s32.totalorder %s25, 1
      %p278 = por %p276, %p277
      %p280 = scmp.ne.s32.totalorder %s263, %s279
      %p281 = scmp.eq.s32.totalorder %s25, 0
      %p282 = por %p280, %p281
      %p283 = scmp.le.s32.totalorder 1, %s19
      %p284 = scmp.lt.s32.totalorder %s19, 3
      %p285 = pnand %p283, %p284
      %p286 = pneg %p285
      // Predicated region
      $region9: #{convnet_forward.1} parent=5 // pred_check
        _
      $region10: #{convnet_forward.1} parent=5 // pred_check_branch
        %288 = sbr.rel (%p285) target = $region12
      $region11: #{convnet_forward.1} parent=5 // pred_region
        %s289 = ssub.s32 %s19, 1
        // Predicated region
        $region13: #{convnet_forward.1} parent=11 // pred_check
          %p290 = pneg %p144
        $region14: #{convnet_forward.1} parent=11 // pred_check_branch
          %292 = sbr.rel (%p290) target = $region16
        $region15: #{convnet_forward.1} parent=11 // pred_region
          _
        $region16: #{convnet_forward.1} parent=11 // pred_fallthru
          _
        // Predicated region
        $region17: #{convnet_forward.1} parent=11 // pred_check
          %p293 = pneg %p165
        $region18: #{convnet_forward.1} parent=11 // pred_check_branch
          %295 = sbr.rel (%p293) target = $region20
        $region19: #{convnet_forward.1} parent=11 // pred_region
          _
        $region20: #{convnet_forward.1} parent=11 // pred_fallthru
          _
        // Predicated region
        $region21: #{convnet_forward.1} parent=11 // pred_check
          %p296 = pneg %p186
        $region22: #{convnet_forward.1} parent=11 // pred_check_branch
          %298 = sbr.rel (%p296) target = $region24
        $region23: #{convnet_forward.1} parent=11 // pred_region
          _
        $region24: #{convnet_forward.1} parent=11 // pred_fallthru
          _
        // Predicated region
        $region25: #{convnet_forward.1} parent=11 // pred_check
          %p299 = pneg %p207
        $region26: #{convnet_forward.1} parent=11 // pred_check_branch
          %301 = sbr.rel (%p299) target = $region28
        $region27: #{convnet_forward.1} parent=11 // pred_region
          _
        $region28: #{convnet_forward.1} parent=11 // pred_fallthru
          _
        // Predicated region
        $region29: #{convnet_forward.1} parent=11 // pred_check
          %p302 = pneg %p228
        $region30: #{convnet_forward.1} parent=11 // pred_check_branch
          %304 = sbr.rel (%p302) target = $region32
        $region31: #{convnet_forward.1} parent=11 // pred_region
          _
        $region32: #{convnet_forward.1} parent=11 // pred_fallthru
          _
        // Predicated region
        $region33: #{convnet_forward.1} parent=11 // pred_check
          %p305 = pneg %p249
        $region34: #{convnet_forward.1} parent=11 // pred_check_branch
          %307 = sbr.rel (%p305) target = $region36
        $region35: #{convnet_forward.1} parent=11 // pred_region
          _
        $region36: #{convnet_forward.1} parent=11 // pred_fallthru
          _
      $region12: #{convnet_forward.1} parent=5 // pred_fallthru
        _
      %p308 = scmp.lt.s32.totalorder %s19, 2
      // Predicated region
      $region37: #{convnet_forward.1} parent=5 // pred_check
        %p309 = pneg %p308
      $region38: #{convnet_forward.1} parent=5 // pred_check_branch
        %311 = sbr.rel (%p309) target = $region40
      $region39: #{convnet_forward.1} parent=5 // pred_region
        // Predicated region
        $region41: #{convnet_forward.1} parent=39 // pred_check
          %p312 = pneg %p39
        $region42: #{convnet_forward.1} parent=39 // pred_check_branch
          %314 = sbr.rel (%p312) target = $region44
        $region43: #{convnet_forward.1} parent=39 // pred_region
          %p315 = scmp.lt.s32.totalorder %s19, 1
          %s316 = scalar_select %p315, %s19, 1
          %s317 = smul.addr %s316, 20
          %s318 = smul.addr %s317, 4
          %s319 = scalar_lea.vmem %s0, %s318
        $region44: #{convnet_forward.1} parent=39 // pred_fallthru
          _
        // Predicated region
        $region45: #{convnet_forward.1} parent=39 // pred_check
          %p320 = pneg %p65
        $region46: #{convnet_forward.1} parent=39 // pred_check_branch
          %322 = sbr.rel (%p320) target = $region48
        $region47: #{convnet_forward.1} parent=39 // pred_region
          %p323 = scmp.lt.s32.totalorder %s19, 1
          %s324 = scalar_select %p323, %s19, 1
          %s325 = smul.addr %s324, 20
          %s326 = smul.addr %s325, 4
          %s327 = scalar_lea.vmem %s1, %s326
        $region48: #{convnet_forward.1} parent=39 // pred_fallthru
          _
        // Predicated region
        $region49: #{convnet_forward.1} parent=39 // pred_check
          %p328 = pneg %p91
        $region50: #{convnet_forward.1} parent=39 // pred_check_branch
          %330 = sbr.rel (%p328) target = $region52
        $region51: #{convnet_forward.1} parent=39 // pred_region
          %p331 = scmp.lt.s32.totalorder %s19, 1
          %s332 = scalar_select %p331, %s19, 1
          %s333 = smul.addr %s332, 20
          %s334 = smul.addr %s333, 4
          %s335 = scalar_lea.vmem %s2, %s334
        $region52: #{convnet_forward.1} parent=39 // pred_fallthru
          _
        // Predicated region
        $region53: #{convnet_forward.1} parent=39 // pred_check
          %p336 = pneg %p117
        $region54: #{convnet_forward.1} parent=39 // pred_check_branch
          %338 = sbr.rel (%p336) target = $region56
        $region55: #{convnet_forward.1} parent=39 // pred_region
          %p339 = scmp.lt.s32.totalorder %s19, 1
          %s340 = scalar_select %p339, %s19, 1
          %s341 = smul.addr %s340, 20
          %s342 = smul.addr %s341, 4
          %s343 = scalar_lea.vmem %s3, %s342
        $region56: #{convnet_forward.1} parent=39 // pred_fallthru
          _
      $region40: #{convnet_forward.1} parent=5 // pred_fallthru
        _
      %p344 = scmp.le.s32.totalorder 1, %s19
      %p345 = scmp.lt.s32.totalorder %s19, 3
      %p346 = pnand %p344, %p345
      %p347 = pneg %p346
      // Predicated region
      $region57: #{convnet_forward.1} parent=5 // pred_check
        _
      $region58: #{convnet_forward.1} parent=5 // pred_check_branch
        %349 = sbr.rel (%p346) target = $region60
      $region59: #{convnet_forward.1} parent=5 // pred_region
        %s350 = ssub.s32 %s19, 1
        %p351 = scmp.lt.s32.totalorder %s24, 1
        %s352 = scalar_select %p351, %s24, 1
        %s353 = smul.addr %s352, 20
        %s354 = smul.addr %s353, 4
        %s355 = scalar_lea.vmem %s0, %s354
        %p356 = pneg %p45
        %p357 = pneg %p42
        %p358 = scmp.lt.s32.totalorder %s24, 1
        %s359 = scalar_select %p358, %s24, 1
        %s360 = smul.addr %s359, 20
        %s361 = smul.addr %s360, 4
        %s362 = scalar_lea.vmem %s1, %s361
        %p363 = pneg %p71
        %p364 = pneg %p68
        %p365 = scmp.lt.s32.totalorder %s24, 1
        %s366 = scalar_select %p365, %s24, 1
        %s367 = smul.addr %s366, 20
        %s368 = smul.addr %s367, 4
        %s369 = scalar_lea.vmem %s2, %s368
        %p370 = pneg %p97
        %p371 = pneg %p94
        %p372 = scmp.lt.s32.totalorder %s24, 1
        %s373 = scalar_select %p372, %s24, 1
        %s374 = smul.addr %s373, 20
        %s375 = smul.addr %s374, 4
        %s376 = scalar_lea.vmem %s3, %s375
        %p377 = pneg %p123
        %p378 = pneg %p120
        %p379 = pneg %p144
        %p380 = pneg %p141
        %p381 = pneg %p165
        %p382 = pneg %p162
        %p383 = pneg %p186
        %p384 = pneg %p183
        %p385 = pneg %p207
        %p386 = pneg %p204
        %p387 = pneg %p228
        %p388 = pneg %p225
        %p389 = pneg %p249
        %p390 = pneg %p246
        %p391 = pneg %p275
        %p392 = pneg %p272
        %s393 = sand.u32 %s262, 1
        %s394 = scalar_lea.sflag [#allocation3], %s393
        %s395 = sand.u32 %s262, 1
        %s396 = scalar_lea.vmem [#allocation2], %s395
        %p397 = scmp.lt.s32.totalorder %s24, 1
        %s398 = scalar_select %p397, %s24, 1
        %s399 = smul.addr %s398, 20
        %s400 = smul.addr %s399, 4
        %s401 = scalar_lea.vmem %s0, %s400
        %p402 = scmp.lt.s32.totalorder %s24, 1
        %s403 = scalar_select %p402, %s24, 1
        %s404 = smul.addr %s403, 20
        %s405 = smul.addr %s404, 4
        %s406 = scalar_lea.vmem %s1, %s405
        %p407 = scmp.lt.s32.totalorder %s24, 1
        %s408 = scalar_select %p407, %s24, 1
        %s409 = smul.addr %s408, 20
        %s410 = smul.addr %s409, 4
        %s411 = scalar_lea.vmem %s2, %s410
        %p412 = scmp.lt.s32.totalorder %s24, 1
        %s413 = scalar_select %p412, %s24, 1
        %s414 = smul.addr %s413, 20
        %s415 = smul.addr %s414, 4
        %s416 = scalar_lea.vmem %s3, %s415
        %v418 = vld [vmem:[%s4] sm:$0x7]
        %v419 = vld [vmem:[%s401] sm:$0xff]
        %v420 = vld [vmem:[%s401 + $0x8] sm:$0xff]
        %v421 = vld [vmem:[%s401 + $0x10] sm:$0xff]
        %v422 = vld [vmem:[%s401 + $0x18] sm:$0xff]
        %v423 = vld [vmem:[%s401 + $0x20] sm:$0xff]
        %v424 = vld [vmem:[%s401 + $0x28] sm:$0xff]
        %v425 = vld [vmem:[%s401 + $0x30] sm:$0xff]
        %v426 = vld [vmem:[%s401 + $0x38] sm:$0xff]
        %v427 = vld [vmem:[%s401 + $0x40] sm:$0xff]
        %v428 = vld [vmem:[%s401 + $0x48] sm:$0x33]
        %v439 = vunpack.c.l.b16 %v419
        %v440 = vunpack.c.h.b16 %v419
        %v441 = vunpack.c.l.b16 %v420
        %v442 = vunpack.c.h.b16 %v420
        %v443 = vunpack.c.l.b16 %v421
        %v444 = vunpack.c.h.b16 %v421
        %v445 = vunpack.c.l.b16 %v422
        %v446 = vunpack.c.h.b16 %v422
        %v447 = vunpack.c.l.b16 %v423
        %v448 = vunpack.c.h.b16 %v423
        %v449 = vunpack.c.l.b16 %v424
        %v450 = vunpack.c.h.b16 %v424
        %v451 = vunpack.c.l.b16 %v425
        %v452 = vunpack.c.h.b16 %v425
        %v453 = vunpack.c.l.b16 %v426
        %v454 = vunpack.c.h.b16 %v426
        %v455 = vunpack.c.l.b16 %v427
        %v456 = vunpack.c.h.b16 %v427
        %v457 = vunpack.c.l.b16 %v428
        %v458 = vunpack.c.h.b16 %v428
        %v459 = vpack.c.b16 %v441, %v439
        %v460 = vpack.c.b16 %v442, %v440
        %v461 = vpack.c.b16 %v445, %v443
        %v462 = vpack.c.b16 %v446, %v444
        %v463 = vpack.c.b16 %v449, %v447
        %v464 = vpack.c.b16 %v450, %v448
        %v465 = vpack.c.b16 %v453, %v451
        %v466 = vpack.c.b16 %v454, %v452
        %v467 = vpack.c.b16 %v457, %v455
        %v468 = vpack.c.b16 %v458, %v456
        %vm477 = vcmask 613376
        %v479 = vsel %vm477, %v418, 0
        %vm481 = vcmask 1044480
        %vm482 = vcmask 1045504
        %v483 = vsel %vm481, 4294967295, 65535
        %v484 = vsel %vm482, %v483, 0
        %v486 = vand.u32 %v467, %v484
        %v489 = vand.u32 %v468, %v484
        %491 = vmatprep.subr.bf16.mxu0 0
        %492 = vmatpush1.bf16.msra.mxu0 0
        %493 = vmatprep.subr.bf16.mxu0 0
        %494 = vmatpush1.bf16.msra.mxu0 0
        %495 = vmatprep.subr.bf16.mxu0 0
        %496 = vmatpush1.bf16.msra.mxu0 0
        %497 = vmatprep.subr.bf16.mxu0 %v489
        %498 = vmatpush1.bf16.msra.mxu0 %v486
        %499 = vmatprep.subr.bf16.mxu0 %v466
        %500 = vmatpush1.bf16.msra.mxu0 %v465
        %501 = vmatprep.subr.bf16.mxu0 %v464
        %502 = vmatpush1.bf16.msra.mxu0 %v463
        %503 = vmatprep.subr.bf16.mxu0 %v462
        %504 = vmatpush1.bf16.msra.mxu0 %v461
        %505 = vmatprep.subr.bf16.mxu0 %v460
        %506 = vmatpush1.bf16.msra.mxu0 %v459
        %507 = vmatprep.subr.bf16.mxu0 0
        %508 = vmatpush2.bf16.msra.mxu0 0
        %509 = vmatprep.subr.bf16.mxu0 0
        %510 = vmatpush2.bf16.msra.mxu0 0
        %511 = vmatprep.subr.bf16.mxu0 0
        %512 = vmatpush2.bf16.msra.mxu0 0
        %513 = vmatprep.subr.bf16.mxu0 0
        %514 = vmatpush2.bf16.msra.mxu0 0
        %515 = vmatprep.subr.bf16.mxu0 0
        %516 = vmatpush2.bf16.msra.mxu0 0
        %517 = vmatprep.subr.bf16.mxu0 0
        %518 = vmatpush2.bf16.msra.mxu0 0
        %519 = vmatprep.subr.bf16.mxu0 0
        %520 = vmatpush2.bf16.msra.mxu0 0
        %521 = vmatprep.subr.bf16.mxu0 0
        %522 = vmatpush2.bf16.msra.mxu0 0
        %523 = vmatprep.mubr.bf16.mxu0 0
        %524 = vmatmul.mubr.bf16.gmra.mxu0 %v479
        %v525 = vpop.f32.mrf.mxu0
        %v526 = vadd.f32 0.0, %v525
        %v527 = vpop.f32.mrf.mxu0
        %v528 = vadd.f32 0.0, %v527
        %v529 = vpop.f32.mrf.mxu0
        %v530 = vpop.f32.mrf.mxu0
        %531 = vdwg.mxu0
        %v532 = vld [vmem:[%s406] sm:$0xff]
        %v533 = vld [vmem:[%s406 + $0x8] sm:$0xff]
        %v534 = vld [vmem:[%s406 + $0x10] sm:$0xff]
        %v535 = vld [vmem:[%s406 + $0x18] sm:$0xff]
        %v536 = vld [vmem:[%s406 + $0x20] sm:$0xff]
        %v537 = vld [vmem:[%s406 + $0x28] sm:$0xff]
        %v538 = vld [vmem:[%s406 + $0x30] sm:$0xff]
        %v539 = vld [vmem:[%s406 + $0x38] sm:$0xff]
        %v540 = vld [vmem:[%s406 + $0x40] sm:$0xff]
        %v541 = vld [vmem:[%s406 + $0x48] sm:$0x33]
        %v552 = vunpack.c.l.b16 %v532
        %v553 = vunpack.c.h.b16 %v532
        %v554 = vunpack.c.l.b16 %v533
        %v555 = vunpack.c.h.b16 %v533
        %v556 = vunpack.c.l.b16 %v534
        %v557 = vunpack.c.h.b16 %v534
        %v558 = vunpack.c.l.b16 %v535
        %v559 = vunpack.c.h.b16 %v535
        %v560 = vunpack.c.l.b16 %v536
        %v561 = vunpack.c.h.b16 %v536
        %v562 = vunpack.c.l.b16 %v537
        %v563 = vunpack.c.h.b16 %v537
        %v564 = vunpack.c.l.b16 %v538
        %v565 = vunpack.c.h.b16 %v538
        %v566 = vunpack.c.l.b16 %v539
        %v567 = vunpack.c.h.b16 %v539
        %v568 = vunpack.c.l.b16 %v540
        %v569 = vunpack.c.h.b16 %v540
        %v570 = vunpack.c.l.b16 %v541
        %v571 = vunpack.c.h.b16 %v541
        %v572 = vpack.c.b16 %v554, %v552
        %v573 = vpack.c.b16 %v555, %v553
        %v574 = vpack.c.b16 %v558, %v556
        %v575 = vpack.c.b16 %v559, %v557
        %v576 = vpack.c.b16 %v562, %v560
        %v577 = vpack.c.b16 %v563, %v561
        %v578 = vpack.c.b16 %v566, %v564
        %v579 = vpack.c.b16 %v567, %v565
        %v580 = vpack.c.b16 %v570, %v568
        %v581 = vpack.c.b16 %v571, %v569
        %v591 = vand.u32 %v580, %v484
        %v594 = vand.u32 %v581, %v484
        %596 = vmatprep.subr.bf16.mxu0 0
        %597 = vmatpush1.bf16.msra.mxu0 0
        %598 = vmatprep.subr.bf16.mxu0 0
        %599 = vmatpush1.bf16.msra.mxu0 0
        %600 = vmatprep.subr.bf16.mxu0 0
        %601 = vmatpush1.bf16.msra.mxu0 0
        %602 = vmatprep.subr.bf16.mxu0 %v594
        %603 = vmatpush1.bf16.msra.mxu0 %v591
        %604 = vmatprep.subr.bf16.mxu0 %v579
        %605 = vmatpush1.bf16.msra.mxu0 %v578
        %606 = vmatprep.subr.bf16.mxu0 %v577
        %607 = vmatpush1.bf16.msra.mxu0 %v576
        %608 = vmatprep.subr.bf16.mxu0 %v575
        %609 = vmatpush1.bf16.msra.mxu0 %v574
        %610 = vmatprep.subr.bf16.mxu0 %v573
        %611 = vmatpush1.bf16.msra.mxu0 %v572
        %612 = vmatprep.subr.bf16.mxu0 0
        %613 = vmatpush2.bf16.msra.mxu0 0
        %614 = vmatprep.subr.bf16.mxu0 0
        %615 = vmatpush2.bf16.msra.mxu0 0
        %616 = vmatprep.subr.bf16.mxu0 0
        %617 = vmatpush2.bf16.msra.mxu0 0
        %618 = vmatprep.subr.bf16.mxu0 0
        %619 = vmatpush2.bf16.msra.mxu0 0
        %620 = vmatprep.subr.bf16.mxu0 0
        %621 = vmatpush2.bf16.msra.mxu0 0
        %622 = vmatprep.subr.bf16.mxu0 0
        %623 = vmatpush2.bf16.msra.mxu0 0
        %624 = vmatprep.subr.bf16.mxu0 0
        %625 = vmatpush2.bf16.msra.mxu0 0
        %626 = vmatprep.subr.bf16.mxu0 0
        %627 = vmatpush2.bf16.msra.mxu0 0
        %628 = vmatprep.mubr.bf16.mxu0 0
        %629 = vmatmul.mubr.bf16.gmra.mxu0 %v479
        %v630 = vpop.f32.mrf.mxu0
        %v631 = vadd.f32 0.0, %v630
        %v632 = vpop.f32.mrf.mxu0
        %v633 = vadd.f32 0.0, %v632
        %v634 = vpop.f32.mrf.mxu0
        %v635 = vpop.f32.mrf.mxu0
        %636 = vdwg.mxu0
        %v637 = vmax.f32 %v526, %v631
        %v638 = vmax.f32 %v528, %v633
        %v639 = vld [vmem:[%s411] sm:$0xff]
        %v640 = vld [vmem:[%s411 + $0x8] sm:$0xff]
        %v641 = vld [vmem:[%s411 + $0x10] sm:$0xff]
        %v642 = vld [vmem:[%s411 + $0x18] sm:$0xff]
        %v643 = vld [vmem:[%s411 + $0x20] sm:$0xff]
        %v644 = vld [vmem:[%s411 + $0x28] sm:$0xff]
        %v645 = vld [vmem:[%s411 + $0x30] sm:$0xff]
        %v646 = vld [vmem:[%s411 + $0x38] sm:$0xff]
        %v647 = vld [vmem:[%s411 + $0x40] sm:$0xff]
        %v648 = vld [vmem:[%s411 + $0x48] sm:$0x33]
        %v659 = vunpack.c.l.b16 %v639
        %v660 = vunpack.c.h.b16 %v639
        %v661 = vunpack.c.l.b16 %v640
        %v662 = vunpack.c.h.b16 %v640
        %v663 = vunpack.c.l.b16 %v641
        %v664 = vunpack.c.h.b16 %v641
        %v665 = vunpack.c.l.b16 %v642
        %v666 = vunpack.c.h.b16 %v642
        %v667 = vunpack.c.l.b16 %v643
        %v668 = vunpack.c.h.b16 %v643
        %v669 = vunpack.c.l.b16 %v644
        %v670 = vunpack.c.h.b16 %v644
        %v671 = vunpack.c.l.b16 %v645
        %v672 = vunpack.c.h.b16 %v645
        %v673 = vunpack.c.l.b16 %v646
        %v674 = vunpack.c.h.b16 %v646
        %v675 = vunpack.c.l.b16 %v647
        %v676 = vunpack.c.h.b16 %v647
        %v677 = vunpack.c.l.b16 %v648
        %v678 = vunpack.c.h.b16 %v648
        %v679 = vpack.c.b16 %v661, %v659
        %v680 = vpack.c.b16 %v662, %v660
        %v681 = vpack.c.b16 %v665, %v663
        %v682 = vpack.c.b16 %v666, %v664
        %v683 = vpack.c.b16 %v669, %v667
        %v684 = vpack.c.b16 %v670, %v668
        %v685 = vpack.c.b16 %v673, %v671
        %v686 = vpack.c.b16 %v674, %v672
        %v687 = vpack.c.b16 %v677, %v675
        %v688 = vpack.c.b16 %v678, %v676
        %v698 = vand.u32 %v687, %v484
        %v701 = vand.u32 %v688, %v484
        %703 = vmatprep.subr.bf16.mxu0 0
        %704 = vmatpush1.bf16.msra.mxu0 0
        %705 = vmatprep.subr.bf16.mxu0 0
        %706 = vmatpush1.bf16.msra.mxu0 0
        %707 = vmatprep.subr.bf16.mxu0 0
        %708 = vmatpush1.bf16.msra.mxu0 0
        %709 = vmatprep.subr.bf16.mxu0 %v701
        %710 = vmatpush1.bf16.msra.mxu0 %v698
        %711 = vmatprep.subr.bf16.mxu0 %v686
        %712 = vmatpush1.bf16.msra.mxu0 %v685
        %713 = vmatprep.subr.bf16.mxu0 %v684
        %714 = vmatpush1.bf16.msra.mxu0 %v683
        %715 = vmatprep.subr.bf16.mxu0 %v682
        %716 = vmatpush1.bf16.msra.mxu0 %v681
        %717 = vmatprep.subr.bf16.mxu0 %v680
        %718 = vmatpush1.bf16.msra.mxu0 %v679
        %719 = vmatprep.subr.bf16.mxu0 0
        %720 = vmatpush2.bf16.msra.mxu0 0
        %721 = vmatprep.subr.bf16.mxu0 0
        %722 = vmatpush2.bf16.msra.mxu0 0
        %723 = vmatprep.subr.bf16.mxu0 0
        %724 = vmatpush2.bf16.msra.mxu0 0
        %725 = vmatprep.subr.bf16.mxu0 0
        %726 = vmatpush2.bf16.msra.mxu0 0
        %727 = vmatprep.subr.bf16.mxu0 0
        %728 = vmatpush2.bf16.msra.mxu0 0
        %729 = vmatprep.subr.bf16.mxu0 0
        %730 = vmatpush2.bf16.msra.mxu0 0
        %731 = vmatprep.subr.bf16.mxu0 0
        %732 = vmatpush2.bf16.msra.mxu0 0
        %733 = vmatprep.subr.bf16.mxu0 0
        %734 = vmatpush2.bf16.msra.mxu0 0
        %735 = vmatprep.mubr.bf16.mxu0 0
        %736 = vmatmul.mubr.bf16.gmra.mxu0 %v479
        %v737 = vpop.f32.mrf.mxu0
        %v738 = vadd.f32 0.0, %v737
        %v739 = vpop.f32.mrf.mxu0
        %v740 = vadd.f32 0.0, %v739
        %v741 = vpop.f32.mrf.mxu0
        %v742 = vpop.f32.mrf.mxu0
        %743 = vdwg.mxu0
        %v744 = vld [vmem:[%s416] sm:$0xff]
        %v745 = vld [vmem:[%s416 + $0x8] sm:$0xff]
        %v746 = vld [vmem:[%s416 + $0x10] sm:$0xff]
        %v747 = vld [vmem:[%s416 + $0x18] sm:$0xff]
        %v748 = vld [vmem:[%s416 + $0x20] sm:$0xff]
        %v749 = vld [vmem:[%s416 + $0x28] sm:$0xff]
        %v750 = vld [vmem:[%s416 + $0x30] sm:$0xff]
        %v751 = vld [vmem:[%s416 + $0x38] sm:$0xff]
        %v752 = vld [vmem:[%s416 + $0x40] sm:$0xff]
        %v753 = vld [vmem:[%s416 + $0x48] sm:$0x33]
        %v764 = vunpack.c.l.b16 %v744
        %v765 = vunpack.c.h.b16 %v744
        %v766 = vunpack.c.l.b16 %v745
        %v767 = vunpack.c.h.b16 %v745
        %v768 = vunpack.c.l.b16 %v746
        %v769 = vunpack.c.h.b16 %v746
        %v770 = vunpack.c.l.b16 %v747
        %v771 = vunpack.c.h.b16 %v747
        %v772 = vunpack.c.l.b16 %v748
        %v773 = vunpack.c.h.b16 %v748
        %v774 = vunpack.c.l.b16 %v749
        %v775 = vunpack.c.h.b16 %v749
        %v776 = vunpack.c.l.b16 %v750
        %v777 = vunpack.c.h.b16 %v750
        %v778 = vunpack.c.l.b16 %v751
        %v779 = vunpack.c.h.b16 %v751
        %v780 = vunpack.c.l.b16 %v752
        %v781 = vunpack.c.h.b16 %v752
        %v782 = vunpack.c.l.b16 %v753
        %v783 = vunpack.c.h.b16 %v753
        %v784 = vpack.c.b16 %v766, %v764
        %v785 = vpack.c.b16 %v767, %v765
        %v786 = vpack.c.b16 %v770, %v768
        %v787 = vpack.c.b16 %v771, %v769
        %v788 = vpack.c.b16 %v774, %v772
        %v789 = vpack.c.b16 %v775, %v773
        %v790 = vpack.c.b16 %v778, %v776
        %v791 = vpack.c.b16 %v779, %v777
        %v792 = vpack.c.b16 %v782, %v780
        %v793 = vpack.c.b16 %v783, %v781
        %v803 = vand.u32 %v792, %v484
        %v806 = vand.u32 %v793, %v484
        %808 = vmatprep.subr.bf16.mxu0 0
        %809 = vmatpush1.bf16.msra.mxu0 0
        %810 = vmatprep.subr.bf16.mxu0 0
        %811 = vmatpush1.bf16.msra.mxu0 0
        %812 = vmatprep.subr.bf16.mxu0 0
        %813 = vmatpush1.bf16.msra.mxu0 0
        %814 = vmatprep.subr.bf16.mxu0 %v806
        %815 = vmatpush1.bf16.msra.mxu0 %v803
        %816 = vmatprep.subr.bf16.mxu0 %v791
        %817 = vmatpush1.bf16.msra.mxu0 %v790
        %818 = vmatprep.subr.bf16.mxu0 %v789
        %819 = vmatpush1.bf16.msra.mxu0 %v788
        %820 = vmatprep.subr.bf16.mxu0 %v787
        %821 = vmatpush1.bf16.msra.mxu0 %v786
        %822 = vmatprep.subr.bf16.mxu0 %v785
        %823 = vmatpush1.bf16.msra.mxu0 %v784
        %824 = vmatprep.subr.bf16.mxu0 0
        %825 = vmatpush2.bf16.msra.mxu0 0
        %826 = vmatprep.subr.bf16.mxu0 0
        %827 = vmatpush2.bf16.msra.mxu0 0
        %828 = vmatprep.subr.bf16.mxu0 0
        %829 = vmatpush2.bf16.msra.mxu0 0
        %830 = vmatprep.subr.bf16.mxu0 0
        %831 = vmatpush2.bf16.msra.mxu0 0
        %832 = vmatprep.subr.bf16.mxu0 0
        %833 = vmatpush2.bf16.msra.mxu0 0
        %834 = vmatprep.subr.bf16.mxu0 0
        %835 = vmatpush2.bf16.msra.mxu0 0
        %836 = vmatprep.subr.bf16.mxu0 0
        %837 = vmatpush2.bf16.msra.mxu0 0
        %838 = vmatprep.subr.bf16.mxu0 0
        %839 = vmatpush2.bf16.msra.mxu0 0
        %840 = vmatprep.mubr.bf16.mxu0 0
        %841 = vmatmul.mubr.bf16.gmra.mxu0 %v479
        %v842 = vpop.f32.mrf.mxu0
        %v843 = vadd.f32 0.0, %v842
        %v844 = vpop.f32.mrf.mxu0
        %v845 = vadd.f32 0.0, %v844
        %v846 = vpop.f32.mrf.mxu0
        %v847 = vpop.f32.mrf.mxu0
        %848 = vdwg.mxu0
        %v849 = vmax.f32 %v738, %v843
        %v850 = vmax.f32 %v740, %v845
        %v851 = vmax.f32 %v637, %v849
        %v852 = vmax.f32 %v638, %v850
        %v853 = vld [vmem:[%s5] sm:$0x3f]
        %855 = vset.pattern.permute.xlu0 0
        %856 = vperm.xlu0 %855, %v853
        %v857 = vpop.permute.xlu0 %856
        %v859 = vadd.f32 %v851, %v857
        %v860 = vadd.f32 %v852, %v857
        %v861 = vmax.f32 %v859, 0.0
        %v862 = vmax.f32 %v860, 0.0
        %v863 = vld [vmem:[%s7] sm:$0x1]
        %v864 = vpack.c.bf16 %v861, %v861
        %v865 = vpack.c.bf16 %v862, %v862
        %v866 = vld [vmem:[%s6] sm:$0xf]
        %v867 = vld [vmem:[%s6 + $0x4] sm:$0xf]
        %v868 = vld [vmem:[%s6 + $0x8] sm:$0xf]
        %v869 = vld [vmem:[%s6 + $0xc] sm:$0xf]
        %v870 = vld [vmem:[%s6 + $0x10] sm:$0xf]
        %v871 = vld [vmem:[%s6 + $0x14] sm:$0xf]
        %v872 = vld [vmem:[%s6 + $0x18] sm:$0xf]
        %v873 = vld [vmem:[%s6 + $0x1c] sm:$0xf]
        %v874 = vld [vmem:[%s6 + $0x20] sm:$0xf]
        %v875 = vld [vmem:[%s6 + $0x24] sm:$0xf]
        %v876 = vld [vmem:[%s6 + $0x28] sm:$0xf]
        %v877 = vld [vmem:[%s6 + $0x2c] sm:$0xf]
        %v878 = vld [vmem:[%s6 + $0x30] sm:$0xf]
        %v879 = vld [vmem:[%s6 + $0x34] sm:$0xf]
        %v880 = vld [vmem:[%s6 + $0x38] sm:$0xf]
        %v881 = vld [vmem:[%s6 + $0x3c] sm:$0xf]
        %v882 = vld [vmem:[%s6 + $0x40] sm:$0xf]
        %v883 = vld [vmem:[%s6 + $0x44] sm:$0xf]
        %v884 = vld [vmem:[%s6 + $0x48] sm:$0xf]
        %v885 = vld [vmem:[%s6 + $0x4c] sm:$0xf]
        %v886 = vld [vmem:[%s6 + $0x50] sm:$0xf]
        %v887 = vld [vmem:[%s6 + $0x54] sm:$0xf]
        %v888 = vld [vmem:[%s6 + $0x58] sm:$0xf]
        %v889 = vld [vmem:[%s6 + $0x5c] sm:$0xf]
        %v890 = vld [vmem:[%s6 + $0x60] sm:$0x3]
        %v916 = vunpack.c.l.b16 %v866
        %v917 = vunpack.c.l.b16 %v867
        %v918 = vunpack.c.l.b16 %v868
        %v919 = vunpack.c.l.b16 %v869
        %v920 = vunpack.c.l.b16 %v870
        %v921 = vunpack.c.l.b16 %v871
        %v922 = vunpack.c.l.b16 %v872
        %v923 = vunpack.c.l.b16 %v873
        %v924 = vunpack.c.l.b16 %v874
        %v925 = vunpack.c.l.b16 %v875
        %v926 = vunpack.c.l.b16 %v876
        %v927 = vunpack.c.l.b16 %v877
        %v928 = vunpack.c.l.b16 %v878
        %v929 = vunpack.c.l.b16 %v879
        %v930 = vunpack.c.l.b16 %v880
        %v931 = vunpack.c.l.b16 %v881
        %v932 = vunpack.c.l.b16 %v882
        %v933 = vunpack.c.l.b16 %v883
        %v934 = vunpack.c.l.b16 %v884
        %v935 = vunpack.c.l.b16 %v885
        %v936 = vunpack.c.l.b16 %v886
        %v937 = vunpack.c.l.b16 %v887
        %v938 = vunpack.c.l.b16 %v888
        %v939 = vunpack.c.l.b16 %v889
        %v940 = vunpack.c.l.b16 %v890
        %v941 = vpack.c.b16 %v917, %v916
        %v942 = vpack.c.b16 %v919, %v918
        %v943 = vpack.c.b16 %v921, %v920
        %v944 = vpack.c.b16 %v923, %v922
        %v945 = vpack.c.b16 %v925, %v924
        %v946 = vpack.c.b16 %v927, %v926
        %v947 = vpack.c.b16 %v929, %v928
        %v948 = vpack.c.b16 %v931, %v930
        %v949 = vpack.c.b16 %v933, %v932
        %v950 = vpack.c.b16 %v935, %v934
        %v951 = vpack.c.b16 %v937, %v936
        %v952 = vpack.c.b16 %v939, %v938
        %v953 = vpack.c.b16 %v940, %v940
        %vm966 = vcmask 556032
        %v968 = vsel %vm966, %v865, 0
        %vm970 = vcmask 1041408
        %v972 = vsel %vm970, %v953, 0
        %974 = vmatprep.subr.bf16.mxu0 0
        %975 = vmatpush1.bf16.msra.mxu0 %v948
        %976 = vmatprep.subr.bf16.mxu0 0
        %977 = vmatpush1.bf16.msra.mxu0 %v947
        %978 = vmatprep.subr.bf16.mxu0 0
        %979 = vmatpush1.bf16.msra.mxu0 %v946
        %980 = vmatprep.subr.bf16.mxu0 0
        %981 = vmatpush1.bf16.msra.mxu0 %v945
        %982 = vmatprep.subr.bf16.mxu0 0
        %983 = vmatpush1.bf16.msra.mxu0 %v944
        %984 = vmatprep.subr.bf16.mxu0 0
        %985 = vmatpush1.bf16.msra.mxu0 %v943
        %986 = vmatprep.subr.bf16.mxu0 0
        %987 = vmatpush1.bf16.msra.mxu0 %v942
        %988 = vmatprep.subr.bf16.mxu0 0
        %989 = vmatpush1.bf16.msra.mxu0 %v941
        %990 = vmatprep.subr.bf16.mxu0 0
        %991 = vmatpush2.bf16.msra.mxu0 0
        %992 = vmatprep.subr.bf16.mxu0 0
        %993 = vmatpush2.bf16.msra.mxu0 0
        %994 = vmatprep.subr.bf16.mxu0 0
        %995 = vmatpush2.bf16.msra.mxu0 0
        %996 = vmatprep.subr.bf16.mxu0 0
        %997 = vmatpush2.bf16.msra.mxu0 %v972
        %998 = vmatprep.subr.bf16.mxu0 0
        %999 = vmatpush2.bf16.msra.mxu0 %v952
        %1000 = vmatprep.subr.bf16.mxu0 0
        %1001 = vmatpush2.bf16.msra.mxu0 %v951
        %1002 = vmatprep.subr.bf16.mxu0 0
        %1003 = vmatpush2.bf16.msra.mxu0 %v950
        %1004 = vmatprep.subr.bf16.mxu0 0
        %1005 = vmatpush2.bf16.msra.mxu0 %v949
        %1006 = vmatprep.mubr.bf16.mxu0 %v968
        %1007 = vmatmul.mubr.bf16.gmra.mxu0 %v864
        %v1008 = vpop.f32.mrf.mxu0
        %v1009 = vadd.f32 0.0, %v1008
        %v1010 = vpop.f32.mrf.mxu0
        %v1011 = vpop.f32.mrf.mxu0
        %v1012 = vpop.f32.mrf.mxu0
        %1013 = vdwg.mxu0
        %v1014 = vadd.f32 %v863, %v1009
        %s1015 = scalar_lea.vmem %s6, 100
        %v1016 = vld [vmem:[%s1015] sm:$0xf]
        %v1017 = vld [vmem:[%s1015 + $0x4] sm:$0xf]
        %v1018 = vld [vmem:[%s1015 + $0x8] sm:$0xf]
        %v1019 = vld [vmem:[%s1015 + $0xc] sm:$0xf]
        %v1020 = vld [vmem:[%s1015 + $0x10] sm:$0xf]
        %v1021 = vld [vmem:[%s1015 + $0x14] sm:$0xf]
        %v1022 = vld [vmem:[%s1015 + $0x18] sm:$0xf]
        %v1023 = vld [vmem:[%s1015 + $0x1c] sm:$0xf]
        %v1024 = vld [vmem:[%s1015 + $0x20] sm:$0xf]
        %v1025 = vld [vmem:[%s1015 + $0x24] sm:$0xf]
        %v1026 = vld [vmem:[%s1015 + $0x28] sm:$0xf]
        %v1027 = vld [vmem:[%s1015 + $0x2c] sm:$0xf]
        %v1028 = vld [vmem:[%s1015 + $0x30] sm:$0xf]
        %v1029 = vld [vmem:[%s1015 + $0x34] sm:$0xf]
        %v1030 = vld [vmem:[%s1015 + $0x38] sm:$0xf]
        %v1031 = vld [vmem:[%s1015 + $0x3c] sm:$0xf]
        %v1032 = vld [vmem:[%s1015 + $0x40] sm:$0xf]
        %v1033 = vld [vmem:[%s1015 + $0x44] sm:$0xf]
        %v1034 = vld [vmem:[%s1015 + $0x48] sm:$0xf]
        %v1035 = vld [vmem:[%s1015 + $0x4c] sm:$0xf]
        %v1036 = vld [vmem:[%s1015 + $0x50] sm:$0xf]
        %v1037 = vld [vmem:[%s1015 + $0x54] sm:$0xf]
        %v1038 = vld [vmem:[%s1015 + $0x58] sm:$0xf]
        %v1039 = vld [vmem:[%s1015 + $0x5c] sm:$0xf]
        %v1040 = vld [vmem:[%s1015 + $0x60] sm:$0x3]
        %v1042 = vshrl.u32 %v864, 16
        %v1044 = vshrl.u32 %v865, 16
        %v1072 = vunpack.c.l.b16 %v1016
        %v1073 = vunpack.c.l.b16 %v1017
        %v1074 = vunpack.c.l.b16 %v1018
        %v1075 = vunpack.c.l.b16 %v1019
        %v1076 = vunpack.c.l.b16 %v1020
        %v1077 = vunpack.c.l.b16 %v1021
        %v1078 = vunpack.c.l.b16 %v1022
        %v1079 = vunpack.c.l.b16 %v1023
        %v1080 = vunpack.c.l.b16 %v1024
        %v1081 = vunpack.c.l.b16 %v1025
        %v1082 = vunpack.c.l.b16 %v1026
        %v1083 = vunpack.c.l.b16 %v1027
        %v1084 = vunpack.c.l.b16 %v1028
        %v1085 = vunpack.c.l.b16 %v1029
        %v1086 = vunpack.c.l.b16 %v1030
        %v1087 = vunpack.c.l.b16 %v1031
        %v1088 = vunpack.c.l.b16 %v1032
        %v1089 = vunpack.c.l.b16 %v1033
        %v1090 = vunpack.c.l.b16 %v1034
        %v1091 = vunpack.c.l.b16 %v1035
        %v1092 = vunpack.c.l.b16 %v1036
        %v1093 = vunpack.c.l.b16 %v1037
        %v1094 = vunpack.c.l.b16 %v1038
        %v1095 = vunpack.c.l.b16 %v1039
        %v1096 = vunpack.c.l.b16 %v1040
        %v1097 = vpack.c.b16 %v1073, %v1072
        %v1098 = vpack.c.b16 %v1075, %v1074
        %v1099 = vpack.c.b16 %v1077, %v1076
        %v1100 = vpack.c.b16 %v1079, %v1078
        %v1101 = vpack.c.b16 %v1081, %v1080
        %v1102 = vpack.c.b16 %v1083, %v1082
        %v1103 = vpack.c.b16 %v1085, %v1084
        %v1104 = vpack.c.b16 %v1087, %v1086
        %v1105 = vpack.c.b16 %v1089, %v1088
        %v1106 = vpack.c.b16 %v1091, %v1090
        %v1107 = vpack.c.b16 %v1093, %v1092
        %v1108 = vpack.c.b16 %v1095, %v1094
        %v1109 = vpack.c.b16 %v1096, %v1096
        %v1123 = vsel %vm966, %v1044, 0
        %v1126 = vsel %vm970, %v1109, 0
        %1128 = vmatprep.subr.bf16.mxu0 0
        %1129 = vmatpush1.bf16.msra.mxu0 %v1104
        %1130 = vmatprep.subr.bf16.mxu0 0
        %1131 = vmatpush1.bf16.msra.mxu0 %v1103
        %1132 = vmatprep.subr.bf16.mxu0 0
        %1133 = vmatpush1.bf16.msra.mxu0 %v1102
        %1134 = vmatprep.subr.bf16.mxu0 0
        %1135 = vmatpush1.bf16.msra.mxu0 %v1101
        %1136 = vmatprep.subr.bf16.mxu0 0
        %1137 = vmatpush1.bf16.msra.mxu0 %v1100
        %1138 = vmatprep.subr.bf16.mxu0 0
        %1139 = vmatpush1.bf16.msra.mxu0 %v1099
        %1140 = vmatprep.subr.bf16.mxu0 0
        %1141 = vmatpush1.bf16.msra.mxu0 %v1098
        %1142 = vmatprep.subr.bf16.mxu0 0
        %1143 = vmatpush1.bf16.msra.mxu0 %v1097
        %1144 = vmatprep.subr.bf16.mxu0 0
        %1145 = vmatpush2.bf16.msra.mxu0 0
        %1146 = vmatprep.subr.bf16.mxu0 0
        %1147 = vmatpush2.bf16.msra.mxu0 0
        %1148 = vmatprep.subr.bf16.mxu0 0
        %1149 = vmatpush2.bf16.msra.mxu0 0
        %1150 = vmatprep.subr.bf16.mxu0 0
        %1151 = vmatpush2.bf16.msra.mxu0 %v1126
        %1152 = vmatprep.subr.bf16.mxu0 0
        %1153 = vmatpush2.bf16.msra.mxu0 %v1108
        %1154 = vmatprep.subr.bf16.mxu0 0
        %1155 = vmatpush2.bf16.msra.mxu0 %v1107
        %1156 = vmatprep.subr.bf16.mxu0 0
        %1157 = vmatpush2.bf16.msra.mxu0 %v1106
        %1158 = vmatprep.subr.bf16.mxu0 0
        %1159 = vmatpush2.bf16.msra.mxu0 %v1105
        %1160 = vmatprep.mubr.bf16.mxu0 %v1123
        %1161 = vmatmul.mubr.bf16.gmra.mxu0 %v1042
        %v1162 = vpop.f32.mrf.mxu0
        %v1163 = vadd.f32 0.0, %v1162
        %v1164 = vpop.f32.mrf.mxu0
        %v1165 = vpop.f32.mrf.mxu0
        %v1166 = vpop.f32.mrf.mxu0
        %1167 = vdwg.mxu0
        %v1168 = vadd.f32 %v1014, %v1163
        %s1169 = scalar_lea.vmem %s6, 200
        %v1170 = vld [vmem:[%s1169] sm:$0xf]
        %v1171 = vld [vmem:[%s1169 + $0x4] sm:$0xf]
        %v1172 = vld [vmem:[%s1169 + $0x8] sm:$0xf]
        %v1173 = vld [vmem:[%s1169 + $0xc] sm:$0xf]
        %v1174 = vld [vmem:[%s1169 + $0x10] sm:$0xf]
        %v1175 = vld [vmem:[%s1169 + $0x14] sm:$0xf]
        %v1176 = vld [vmem:[%s1169 + $0x18] sm:$0xf]
        %v1177 = vld [vmem:[%s1169 + $0x1c] sm:$0xf]
        %v1178 = vld [vmem:[%s1169 + $0x20] sm:$0xf]
        %v1179 = vld [vmem:[%s1169 + $0x24] sm:$0xf]
        %v1180 = vld [vmem:[%s1169 + $0x28] sm:$0xf]
        %v1181 = vld [vmem:[%s1169 + $0x2c] sm:$0xf]
        %v1182 = vld [vmem:[%s1169 + $0x30] sm:$0xf]
        %v1183 = vld [vmem:[%s1169 + $0x34] sm:$0xf]
        %v1184 = vld [vmem:[%s1169 + $0x38] sm:$0xf]
        %v1185 = vld [vmem:[%s1169 + $0x3c] sm:$0xf]
        %v1186 = vld [vmem:[%s1169 + $0x40] sm:$0xf]
        %v1187 = vld [vmem:[%s1169 + $0x44] sm:$0xf]
        %v1188 = vld [vmem:[%s1169 + $0x48] sm:$0xf]
        %v1189 = vld [vmem:[%s1169 + $0x4c] sm:$0xf]
        %v1190 = vld [vmem:[%s1169 + $0x50] sm:$0xf]
        %v1191 = vld [vmem:[%s1169 + $0x54] sm:$0xf]
        %v1192 = vld [vmem:[%s1169 + $0x58] sm:$0xf]
        %v1193 = vld [vmem:[%s1169 + $0x5c] sm:$0xf]
        %v1194 = vld [vmem:[%s1169 + $0x60] sm:$0x3]
        %v1197 = vrot.slane %v864, 1
        %v1198 = vrot.slane %v865, 1
        %v1225 = vunpack.c.l.b16 %v1170
        %v1226 = vunpack.c.l.b16 %v1171
        %v1227 = vunpack.c.l.b16 %v1172
        %v1228 = vunpack.c.l.b16 %v1173
        %v1229 = vunpack.c.l.b16 %v1174
        %v1230 = vunpack.c.l.b16 %v1175
        %v1231 = vunpack.c.l.b16 %v1176
        %v1232 = vunpack.c.l.b16 %v1177
        %v1233 = vunpack.c.l.b16 %v1178
        %v1234 = vunpack.c.l.b16 %v1179
        %v1235 = vunpack.c.l.b16 %v1180
        %v1236 = vunpack.c.l.b16 %v1181
        %v1237 = vunpack.c.l.b16 %v1182
        %v1238 = vunpack.c.l.b16 %v1183
        %v1239 = vunpack.c.l.b16 %v1184
        %v1240 = vunpack.c.l.b16 %v1185
        %v1241 = vunpack.c.l.b16 %v1186
        %v1242 = vunpack.c.l.b16 %v1187
        %v1243 = vunpack.c.l.b16 %v1188
        %v1244 = vunpack.c.l.b16 %v1189
        %v1245 = vunpack.c.l.b16 %v1190
        %v1246 = vunpack.c.l.b16 %v1191
        %v1247 = vunpack.c.l.b16 %v1192
        %v1248 = vunpack.c.l.b16 %v1193
        %v1249 = vunpack.c.l.b16 %v1194
        %v1250 = vpack.c.b16 %v1226, %v1225
        %v1251 = vpack.c.b16 %v1228, %v1227
        %v1252 = vpack.c.b16 %v1230, %v1229
        %v1253 = vpack.c.b16 %v1232, %v1231
        %v1254 = vpack.c.b16 %v1234, %v1233
        %v1255 = vpack.c.b16 %v1236, %v1235
        %v1256 = vpack.c.b16 %v1238, %v1237
        %v1257 = vpack.c.b16 %v1240, %v1239
        %v1258 = vpack.c.b16 %v1242, %v1241
        %v1259 = vpack.c.b16 %v1244, %v1243
        %v1260 = vpack.c.b16 %v1246, %v1245
        %v1261 = vpack.c.b16 %v1248, %v1247
        %v1262 = vpack.c.b16 %v1249, %v1249
        %v1276 = vsel %vm966, %v1198, 0
        %v1279 = vsel %vm970, %v1262, 0
        %1281 = vmatprep.subr.bf16.mxu0 0
        %1282 = vmatpush1.bf16.msra.mxu0 %v1257
        %1283 = vmatprep.subr.bf16.mxu0 0
        %1284 = vmatpush1.bf16.msra.mxu0 %v1256
        %1285 = vmatprep.subr.bf16.mxu0 0
        %1286 = vmatpush1.bf16.msra.mxu0 %v1255
        %1287 = vmatprep.subr.bf16.mxu0 0
        %1288 = vmatpush1.bf16.msra.mxu0 %v1254
        %1289 = vmatprep.subr.bf16.mxu0 0
        %1290 = vmatpush1.bf16.msra.mxu0 %v1253
        %1291 = vmatprep.subr.bf16.mxu0 0
        %1292 = vmatpush1.bf16.msra.mxu0 %v1252
        %1293 = vmatprep.subr.bf16.mxu0 0
        %1294 = vmatpush1.bf16.msra.mxu0 %v1251
        %1295 = vmatprep.subr.bf16.mxu0 0
        %1296 = vmatpush1.bf16.msra.mxu0 %v1250
        %1297 = vmatprep.subr.bf16.mxu0 0
        %1298 = vmatpush2.bf16.msra.mxu0 0
        %1299 = vmatprep.subr.bf16.mxu0 0
        %1300 = vmatpush2.bf16.msra.mxu0 0
        %1301 = vmatprep.subr.bf16.mxu0 0
        %1302 = vmatpush2.bf16.msra.mxu0 0
        %1303 = vmatprep.subr.bf16.mxu0 0
        %1304 = vmatpush2.bf16.msra.mxu0 %v1279
        %1305 = vmatprep.subr.bf16.mxu0 0
        %1306 = vmatpush2.bf16.msra.mxu0 %v1261
        %1307 = vmatprep.subr.bf16.mxu0 0
        %1308 = vmatpush2.bf16.msra.mxu0 %v1260
        %1309 = vmatprep.subr.bf16.mxu0 0
        %1310 = vmatpush2.bf16.msra.mxu0 %v1259
        %1311 = vmatprep.subr.bf16.mxu0 0
        %1312 = vmatpush2.bf16.msra.mxu0 %v1258
        %1313 = vmatprep.mubr.bf16.mxu0 %v1276
        %1314 = vmatmul.mubr.bf16.gmra.mxu0 %v1197
        %v1315 = vpop.f32.mrf.mxu0
        %v1316 = vadd.f32 0.0, %v1315
        %v1317 = vpop.f32.mrf.mxu0
        %v1318 = vpop.f32.mrf.mxu0
        %v1319 = vpop.f32.mrf.mxu0
        %1320 = vdwg.mxu0
        %v1321 = vadd.f32 %v1168, %v1316
        %s1322 = scalar_lea.vmem %s6, 300
        %v1323 = vld [vmem:[%s1322] sm:$0xf]
        %v1324 = vld [vmem:[%s1322 + $0x4] sm:$0xf]
        %v1325 = vld [vmem:[%s1322 + $0x8] sm:$0xf]
        %v1326 = vld [vmem:[%s1322 + $0xc] sm:$0xf]
        %v1327 = vld [vmem:[%s1322 + $0x10] sm:$0xf]
        %v1328 = vld [vmem:[%s1322 + $0x14] sm:$0xf]
        %v1329 = vld [vmem:[%s1322 + $0x18] sm:$0xf]
        %v1330 = vld [vmem:[%s1322 + $0x1c] sm:$0xf]
        %v1331 = vld [vmem:[%s1322 + $0x20] sm:$0xf]
        %v1332 = vld [vmem:[%s1322 + $0x24] sm:$0xf]
        %v1333 = vld [vmem:[%s1322 + $0x28] sm:$0xf]
        %v1334 = vld [vmem:[%s1322 + $0x2c] sm:$0xf]
        %v1335 = vld [vmem:[%s1322 + $0x30] sm:$0xf]
        %v1336 = vld [vmem:[%s1322 + $0x34] sm:$0xf]
        %v1337 = vld [vmem:[%s1322 + $0x38] sm:$0xf]
        %v1338 = vld [vmem:[%s1322 + $0x3c] sm:$0xf]
        %v1339 = vld [vmem:[%s1322 + $0x40] sm:$0xf]
        %v1340 = vld [vmem:[%s1322 + $0x44] sm:$0xf]
        %v1341 = vld [vmem:[%s1322 + $0x48] sm:$0xf]
        %v1342 = vld [vmem:[%s1322 + $0x4c] sm:$0xf]
        %v1343 = vld [vmem:[%s1322 + $0x50] sm:$0xf]
        %v1344 = vld [vmem:[%s1322 + $0x54] sm:$0xf]
        %v1345 = vld [vmem:[%s1322 + $0x58] sm:$0xf]
        %v1346 = vld [vmem:[%s1322 + $0x5c] sm:$0xf]
        %v1347 = vld [vmem:[%s1322 + $0x60] sm:$0x3]
        %v1348 = vrot.slane %v1042, 1
        %v1349 = vrot.slane %v1044, 1
        %v1376 = vunpack.c.l.b16 %v1323
        %v1377 = vunpack.c.l.b16 %v1324
        %v1378 = vunpack.c.l.b16 %v1325
        %v1379 = vunpack.c.l.b16 %v1326
        %v1380 = vunpack.c.l.b16 %v1327
        %v1381 = vunpack.c.l.b16 %v1328
        %v1382 = vunpack.c.l.b16 %v1329
        %v1383 = vunpack.c.l.b16 %v1330
        %v1384 = vunpack.c.l.b16 %v1331
        %v1385 = vunpack.c.l.b16 %v1332
        %v1386 = vunpack.c.l.b16 %v1333
        %v1387 = vunpack.c.l.b16 %v1334
        %v1388 = vunpack.c.l.b16 %v1335
        %v1389 = vunpack.c.l.b16 %v1336
        %v1390 = vunpack.c.l.b16 %v1337
        %v1391 = vunpack.c.l.b16 %v1338
        %v1392 = vunpack.c.l.b16 %v1339
        %v1393 = vunpack.c.l.b16 %v1340
        %v1394 = vunpack.c.l.b16 %v1341
        %v1395 = vunpack.c.l.b16 %v1342
        %v1396 = vunpack.c.l.b16 %v1343
        %v1397 = vunpack.c.l.b16 %v1344
        %v1398 = vunpack.c.l.b16 %v1345
        %v1399 = vunpack.c.l.b16 %v1346
        %v1400 = vunpack.c.l.b16 %v1347
        %v1401 = vpack.c.b16 %v1377, %v1376
        %v1402 = vpack.c.b16 %v1379, %v1378
        %v1403 = vpack.c.b16 %v1381, %v1380
        %v1404 = vpack.c.b16 %v1383, %v1382
        %v1405 = vpack.c.b16 %v1385, %v1384
        %v1406 = vpack.c.b16 %v1387, %v1386
        %v1407 = vpack.c.b16 %v1389, %v1388
        %v1408 = vpack.c.b16 %v1391, %v1390
        %v1409 = vpack.c.b16 %v1393, %v1392
        %v1410 = vpack.c.b16 %v1395, %v1394
        %v1411 = vpack.c.b16 %v1397, %v1396
        %v1412 = vpack.c.b16 %v1399, %v1398
        %v1413 = vpack.c.b16 %v1400, %v1400
        %v1427 = vsel %vm966, %v1349, 0
        %v1430 = vsel %vm970, %v1413, 0
        %1432 = vmatprep.subr.bf16.mxu0 0
        %1433 = vmatpush1.bf16.msra.mxu0 %v1408
        %1434 = vmatprep.subr.bf16.mxu0 0
        %1435 = vmatpush1.bf16.msra.mxu0 %v1407
        %1436 = vmatprep.subr.bf16.mxu0 0
        %1437 = vmatpush1.bf16.msra.mxu0 %v1406
        %1438 = vmatprep.subr.bf16.mxu0 0
        %1439 = vmatpush1.bf16.msra.mxu0 %v1405
        %1440 = vmatprep.subr.bf16.mxu0 0
        %1441 = vmatpush1.bf16.msra.mxu0 %v1404
        %1442 = vmatprep.subr.bf16.mxu0 0
        %1443 = vmatpush1.bf16.msra.mxu0 %v1403
        %1444 = vmatprep.subr.bf16.mxu0 0
        %1445 = vmatpush1.bf16.msra.mxu0 %v1402
        %1446 = vmatprep.subr.bf16.mxu0 0
        %1447 = vmatpush1.bf16.msra.mxu0 %v1401
        %1448 = vmatprep.subr.bf16.mxu0 0
        %1449 = vmatpush2.bf16.msra.mxu0 0
        %1450 = vmatprep.subr.bf16.mxu0 0
        %1451 = vmatpush2.bf16.msra.mxu0 0
        %1452 = vmatprep.subr.bf16.mxu0 0
        %1453 = vmatpush2.bf16.msra.mxu0 0
        %1454 = vmatprep.subr.bf16.mxu0 0
        %1455 = vmatpush2.bf16.msra.mxu0 %v1430
        %1456 = vmatprep.subr.bf16.mxu0 0
        %1457 = vmatpush2.bf16.msra.mxu0 %v1412
        %1458 = vmatprep.subr.bf16.mxu0 0
        %1459 = vmatpush2.bf16.msra.mxu0 %v1411
        %1460 = vmatprep.subr.bf16.mxu0 0
        %1461 = vmatpush2.bf16.msra.mxu0 %v1410
        %1462 = vmatprep.subr.bf16.mxu0 0
        %1463 = vmatpush2.bf16.msra.mxu0 %v1409
        %1464 = vmatprep.mubr.bf16.mxu0 %v1427
        %1465 = vmatmul.mubr.bf16.gmra.mxu0 %v1348
        %v1466 = vpop.f32.mrf.mxu0
        %v1467 = vadd.f32 0.0, %v1466
        %v1468 = vpop.f32.mrf.mxu0
        %v1469 = vpop.f32.mrf.mxu0
        %v1470 = vpop.f32.mrf.mxu0
        %1471 = vdwg.mxu0
        %v1472 = vadd.f32 %v1321, %v1467
        %s1473 = scalar_lea.vmem %s6, 400
        %v1474 = vld [vmem:[%s1473] sm:$0xf]
        %v1475 = vld [vmem:[%s1473 + $0x4] sm:$0xf]
        %v1476 = vld [vmem:[%s1473 + $0x8] sm:$0xf]
        %v1477 = vld [vmem:[%s1473 + $0xc] sm:$0xf]
        %v1478 = vld [vmem:[%s1473 + $0x10] sm:$0xf]
        %v1479 = vld [vmem:[%s1473 + $0x14] sm:$0xf]
        %v1480 = vld [vmem:[%s1473 + $0x18] sm:$0xf]
        %v1481 = vld [vmem:[%s1473 + $0x1c] sm:$0xf]
        %v1482 = vld [vmem:[%s1473 + $0x20] sm:$0xf]
        %v1483 = vld [vmem:[%s1473 + $0x24] sm:$0xf]
        %v1484 = vld [vmem:[%s1473 + $0x28] sm:$0xf]
        %v1485 = vld [vmem:[%s1473 + $0x2c] sm:$0xf]
        %v1486 = vld [vmem:[%s1473 + $0x30] sm:$0xf]
        %v1487 = vld [vmem:[%s1473 + $0x34] sm:$0xf]
        %v1488 = vld [vmem:[%s1473 + $0x38] sm:$0xf]
        %v1489 = vld [vmem:[%s1473 + $0x3c] sm:$0xf]
        %v1490 = vld [vmem:[%s1473 + $0x40] sm:$0xf]
        %v1491 = vld [vmem:[%s1473 + $0x44] sm:$0xf]
        %v1492 = vld [vmem:[%s1473 + $0x48] sm:$0xf]
        %v1493 = vld [vmem:[%s1473 + $0x4c] sm:$0xf]
        %v1494 = vld [vmem:[%s1473 + $0x50] sm:$0xf]
        %v1495 = vld [vmem:[%s1473 + $0x54] sm:$0xf]
        %v1496 = vld [vmem:[%s1473 + $0x58] sm:$0xf]
        %v1497 = vld [vmem:[%s1473 + $0x5c] sm:$0xf]
        %v1498 = vld [vmem:[%s1473 + $0x60] sm:$0x3]
        %v1499 = vrot.slane %v864, 2
        %v1500 = vrot.slane %v865, 2
        %v1527 = vunpack.c.l.b16 %v1474
        %v1528 = vunpack.c.l.b16 %v1475
        %v1529 = vunpack.c.l.b16 %v1476
        %v1530 = vunpack.c.l.b16 %v1477
        %v1531 = vunpack.c.l.b16 %v1478
        %v1532 = vunpack.c.l.b16 %v1479
        %v1533 = vunpack.c.l.b16 %v1480
        %v1534 = vunpack.c.l.b16 %v1481
        %v1535 = vunpack.c.l.b16 %v1482
        %v1536 = vunpack.c.l.b16 %v1483
        %v1537 = vunpack.c.l.b16 %v1484
        %v1538 = vunpack.c.l.b16 %v1485
        %v1539 = vunpack.c.l.b16 %v1486
        %v1540 = vunpack.c.l.b16 %v1487
        %v1541 = vunpack.c.l.b16 %v1488
        %v1542 = vunpack.c.l.b16 %v1489
        %v1543 = vunpack.c.l.b16 %v1490
        %v1544 = vunpack.c.l.b16 %v1491
        %v1545 = vunpack.c.l.b16 %v1492
        %v1546 = vunpack.c.l.b16 %v1493
        %v1547 = vunpack.c.l.b16 %v1494
        %v1548 = vunpack.c.l.b16 %v1495
        %v1549 = vunpack.c.l.b16 %v1496
        %v1550 = vunpack.c.l.b16 %v1497
        %v1551 = vunpack.c.l.b16 %v1498
        %v1552 = vpack.c.b16 %v1528, %v1527
        %v1553 = vpack.c.b16 %v1530, %v1529
        %v1554 = vpack.c.b16 %v1532, %v1531
        %v1555 = vpack.c.b16 %v1534, %v1533
        %v1556 = vpack.c.b16 %v1536, %v1535
        %v1557 = vpack.c.b16 %v1538, %v1537
        %v1558 = vpack.c.b16 %v1540, %v1539
        %v1559 = vpack.c.b16 %v1542, %v1541
        %v1560 = vpack.c.b16 %v1544, %v1543
        %v1561 = vpack.c.b16 %v1546, %v1545
        %v1562 = vpack.c.b16 %v1548, %v1547
        %v1563 = vpack.c.b16 %v1550, %v1549
        %v1564 = vpack.c.b16 %v1551, %v1551
        %v1578 = vsel %vm966, %v1500, 0
        %v1581 = vsel %vm970, %v1564, 0
        %1583 = vmatprep.subr.bf16.mxu0 0
        %1584 = vmatpush1.bf16.msra.mxu0 %v1559
        %1585 = vmatprep.subr.bf16.mxu0 0
        %1586 = vmatpush1.bf16.msra.mxu0 %v1558
        %1587 = vmatprep.subr.bf16.mxu0 0
        %1588 = vmatpush1.bf16.msra.mxu0 %v1557
        %1589 = vmatprep.subr.bf16.mxu0 0
        %1590 = vmatpush1.bf16.msra.mxu0 %v1556
        %1591 = vmatprep.subr.bf16.mxu0 0
        %1592 = vmatpush1.bf16.msra.mxu0 %v1555
        %1593 = vmatprep.subr.bf16.mxu0 0
        %1594 = vmatpush1.bf16.msra.mxu0 %v1554
        %1595 = vmatprep.subr.bf16.mxu0 0
        %1596 = vmatpush1.bf16.msra.mxu0 %v1553
        %1597 = vmatprep.subr.bf16.mxu0 0
        %1598 = vmatpush1.bf16.msra.mxu0 %v1552
        %1599 = vmatprep.subr.bf16.mxu0 0
        %1600 = vmatpush2.bf16.msra.mxu0 0
        %1601 = vmatprep.subr.bf16.mxu0 0
        %1602 = vmatpush2.bf16.msra.mxu0 0
        %1603 = vmatprep.subr.bf16.mxu0 0
        %1604 = vmatpush2.bf16.msra.mxu0 0
        %1605 = vmatprep.subr.bf16.mxu0 0
        %1606 = vmatpush2.bf16.msra.mxu0 %v1581
        %1607 = vmatprep.subr.bf16.mxu0 0
        %1608 = vmatpush2.bf16.msra.mxu0 %v1563
        %1609 = vmatprep.subr.bf16.mxu0 0
        %1610 = vmatpush2.bf16.msra.mxu0 %v1562
        %1611 = vmatprep.subr.bf16.mxu0 0
        %1612 = vmatpush2.bf16.msra.mxu0 %v1561
        %1613 = vmatprep.subr.bf16.mxu0 0
        %1614 = vmatpush2.bf16.msra.mxu0 %v1560
        %1615 = vmatprep.mubr.bf16.mxu0 %v1578
        %1616 = vmatmul.mubr.bf16.gmra.mxu0 %v1499
        %v1617 = vpop.f32.mrf.mxu0
        %v1618 = vadd.f32 0.0, %v1617
        %v1619 = vpop.f32.mrf.mxu0
        %v1620 = vpop.f32.mrf.mxu0
        %v1621 = vpop.f32.mrf.mxu0
        %1622 = vdwg.mxu0
        %v1623 = vadd.f32 %v1472, %v1618
        %s1624 = scalar_lea.vmem %s6, 500
        %v1625 = vld [vmem:[%s1624] sm:$0xf]
        %v1626 = vld [vmem:[%s1624 + $0x4] sm:$0xf]
        %v1627 = vld [vmem:[%s1624 + $0x8] sm:$0xf]
        %v1628 = vld [vmem:[%s1624 + $0xc] sm:$0xf]
        %v1629 = vld [vmem:[%s1624 + $0x10] sm:$0xf]
        %v1630 = vld [vmem:[%s1624 + $0x14] sm:$0xf]
        %v1631 = vld [vmem:[%s1624 + $0x18] sm:$0xf]
        %v1632 = vld [vmem:[%s1624 + $0x1c] sm:$0xf]
        %v1633 = vld [vmem:[%s1624 + $0x20] sm:$0xf]
        %v1634 = vld [vmem:[%s1624 + $0x24] sm:$0xf]
        %v1635 = vld [vmem:[%s1624 + $0x28] sm:$0xf]
        %v1636 = vld [vmem:[%s1624 + $0x2c] sm:$0xf]
        %v1637 = vld [vmem:[%s1624 + $0x30] sm:$0xf]
        %v1638 = vld [vmem:[%s1624 + $0x34] sm:$0xf]
        %v1639 = vld [vmem:[%s1624 + $0x38] sm:$0xf]
        %v1640 = vld [vmem:[%s1624 + $0x3c] sm:$0xf]
        %v1641 = vld [vmem:[%s1624 + $0x40] sm:$0xf]
        %v1642 = vld [vmem:[%s1624 + $0x44] sm:$0xf]
        %v1643 = vld [vmem:[%s1624 + $0x48] sm:$0xf]
        %v1644 = vld [vmem:[%s1624 + $0x4c] sm:$0xf]
        %v1645 = vld [vmem:[%s1624 + $0x50] sm:$0xf]
        %v1646 = vld [vmem:[%s1624 + $0x54] sm:$0xf]
        %v1647 = vld [vmem:[%s1624 + $0x58] sm:$0xf]
        %v1648 = vld [vmem:[%s1624 + $0x5c] sm:$0xf]
        %v1649 = vld [vmem:[%s1624 + $0x60] sm:$0x3]
        %v1650 = vrot.slane %v1042, 2
        %v1651 = vrot.slane %v1044, 2
        %v1678 = vunpack.c.l.b16 %v1625
        %v1679 = vunpack.c.l.b16 %v1626
        %v1680 = vunpack.c.l.b16 %v1627
        %v1681 = vunpack.c.l.b16 %v1628
        %v1682 = vunpack.c.l.b16 %v1629
        %v1683 = vunpack.c.l.b16 %v1630
        %v1684 = vunpack.c.l.b16 %v1631
        %v1685 = vunpack.c.l.b16 %v1632
        %v1686 = vunpack.c.l.b16 %v1633
        %v1687 = vunpack.c.l.b16 %v1634
        %v1688 = vunpack.c.l.b16 %v1635
        %v1689 = vunpack.c.l.b16 %v1636
        %v1690 = vunpack.c.l.b16 %v1637
        %v1691 = vunpack.c.l.b16 %v1638
        %v1692 = vunpack.c.l.b16 %v1639
        %v1693 = vunpack.c.l.b16 %v1640
        %v1694 = vunpack.c.l.b16 %v1641
        %v1695 = vunpack.c.l.b16 %v1642
        %v1696 = vunpack.c.l.b16 %v1643
        %v1697 = vunpack.c.l.b16 %v1644
        %v1698 = vunpack.c.l.b16 %v1645
        %v1699 = vunpack.c.l.b16 %v1646
        %v1700 = vunpack.c.l.b16 %v1647
        %v1701 = vunpack.c.l.b16 %v1648
        %v1702 = vunpack.c.l.b16 %v1649
        %v1703 = vpack.c.b16 %v1679, %v1678
        %v1704 = vpack.c.b16 %v1681, %v1680
        %v1705 = vpack.c.b16 %v1683, %v1682
        %v1706 = vpack.c.b16 %v1685, %v1684
        %v1707 = vpack.c.b16 %v1687, %v1686
        %v1708 = vpack.c.b16 %v1689, %v1688
        %v1709 = vpack.c.b16 %v1691, %v1690
        %v1710 = vpack.c.b16 %v1693, %v1692
        %v1711 = vpack.c.b16 %v1695, %v1694
        %v1712 = vpack.c.b16 %v1697, %v1696
        %v1713 = vpack.c.b16 %v1699, %v1698
        %v1714 = vpack.c.b16 %v1701, %v1700
        %v1715 = vpack.c.b16 %v1702, %v1702
        %v1729 = vsel %vm966, %v1651, 0
        %v1732 = vsel %vm970, %v1715, 0
        %1734 = vmatprep.subr.bf16.mxu0 0
        %1735 = vmatpush1.bf16.msra.mxu0 %v1710
        %1736 = vmatprep.subr.bf16.mxu0 0
        %1737 = vmatpush1.bf16.msra.mxu0 %v1709
        %1738 = vmatprep.subr.bf16.mxu0 0
        %1739 = vmatpush1.bf16.msra.mxu0 %v1708
        %1740 = vmatprep.subr.bf16.mxu0 0
        %1741 = vmatpush1.bf16.msra.mxu0 %v1707
        %1742 = vmatprep.subr.bf16.mxu0 0
        %1743 = vmatpush1.bf16.msra.mxu0 %v1706
        %1744 = vmatprep.subr.bf16.mxu0 0
        %1745 = vmatpush1.bf16.msra.mxu0 %v1705
        %1746 = vmatprep.subr.bf16.mxu0 0
        %1747 = vmatpush1.bf16.msra.mxu0 %v1704
        %1748 = vmatprep.subr.bf16.mxu0 0
        %1749 = vmatpush1.bf16.msra.mxu0 %v1703
        %1750 = vmatprep.subr.bf16.mxu0 0
        %1751 = vmatpush2.bf16.msra.mxu0 0
        %1752 = vmatprep.subr.bf16.mxu0 0
        %1753 = vmatpush2.bf16.msra.mxu0 0
        %1754 = vmatprep.subr.bf16.mxu0 0
        %1755 = vmatpush2.bf16.msra.mxu0 0
        %1756 = vmatprep.subr.bf16.mxu0 0
        %1757 = vmatpush2.bf16.msra.mxu0 %v1732
        %1758 = vmatprep.subr.bf16.mxu0 0
        %1759 = vmatpush2.bf16.msra.mxu0 %v1714
        %1760 = vmatprep.subr.bf16.mxu0 0
        %1761 = vmatpush2.bf16.msra.mxu0 %v1713
        %1762 = vmatprep.subr.bf16.mxu0 0
        %1763 = vmatpush2.bf16.msra.mxu0 %v1712
        %1764 = vmatprep.subr.bf16.mxu0 0
        %1765 = vmatpush2.bf16.msra.mxu0 %v1711
        %1766 = vmatprep.mubr.bf16.mxu0 %v1729
        %1767 = vmatmul.mubr.bf16.gmra.mxu0 %v1650
        %v1768 = vpop.f32.mrf.mxu0
        %v1769 = vadd.f32 0.0, %v1768
        %v1770 = vpop.f32.mrf.mxu0
        %v1771 = vpop.f32.mrf.mxu0
        %v1772 = vpop.f32.mrf.mxu0
        %1773 = vdwg.mxu0
        %v1774 = vadd.f32 %v1623, %v1769
        %v1775 = vmax.f32 %v1774, 0.0
        %v1776 = vpack.c.bf16 %v1775, %v1775
        %v1777 = vld [vmem:[%s8] sm:$0xf]
        %v1778 = vld [vmem:[%s8 + $0x4] sm:$0xf]
        %v1779 = vld [vmem:[%s8 + $0x8] sm:$0xf]
        %v1780 = vld [vmem:[%s8 + $0xc] sm:$0xf]
        %v1781 = vld [vmem:[%s8 + $0x10] sm:$0xf]
        %v1782 = vld [vmem:[%s8 + $0x14] sm:$0xf]
        %v1783 = vld [vmem:[%s8 + $0x18] sm:$0xf]
        %v1784 = vld [vmem:[%s8 + $0x1c] sm:$0xf]
        %v1785 = vld [vmem:[%s8 + $0x20] sm:$0xf]
        %v1786 = vld [vmem:[%s8 + $0x24] sm:$0xf]
        %v1787 = vld [vmem:[%s8 + $0x28] sm:$0x3]
        %v1788 = vld [vmem:[%s9] sm:$0x1]
        %v1800 = vunpack.c.l.b16 %v1777
        %v1801 = vunpack.c.l.b16 %v1778
        %v1802 = vunpack.c.l.b16 %v1779
        %v1803 = vunpack.c.l.b16 %v1780
        %v1804 = vunpack.c.l.b16 %v1781
        %v1805 = vunpack.c.l.b16 %v1782
        %v1806 = vunpack.c.l.b16 %v1783
        %v1807 = vunpack.c.l.b16 %v1784
        %v1808 = vunpack.c.l.b16 %v1785
        %v1809 = vunpack.c.l.b16 %v1786
        %v1810 = vunpack.c.l.b16 %v1787
        %v1811 = vpack.c.b16 %v1801, %v1800
        %v1812 = vpack.c.b16 %v1803, %v1802
        %v1813 = vpack.c.b16 %v1805, %v1804
        %v1814 = vpack.c.b16 %v1807, %v1806
        %v1815 = vpack.c.b16 %v1809, %v1808
        %v1816 = vpack.c.b16 %v1810, %v1810
        %vm1822 = vcmask 687104
        %v1824 = vsel %vm1822, %v1776, 0
        %v1827 = vsel %vm970, %v1816, 0
        %1829 = vmatprep.subr.bf16.mxu0 0
        %1830 = vmatpush1.bf16.msra.mxu0 0
        %1831 = vmatprep.subr.bf16.mxu0 0
        %1832 = vmatpush1.bf16.msra.mxu0 0
        %1833 = vmatprep.subr.bf16.mxu0 0
        %1834 = vmatpush1.bf16.msra.mxu0 %v1827
        %1835 = vmatprep.subr.bf16.mxu0 0
        %1836 = vmatpush1.bf16.msra.mxu0 %v1815
        %1837 = vmatprep.subr.bf16.mxu0 0
        %1838 = vmatpush1.bf16.msra.mxu0 %v1814
        %1839 = vmatprep.subr.bf16.mxu0 0
        %1840 = vmatpush1.bf16.msra.mxu0 %v1813
        %1841 = vmatprep.subr.bf16.mxu0 0
        %1842 = vmatpush1.bf16.msra.mxu0 %v1812
        %1843 = vmatprep.subr.bf16.mxu0 0
        %1844 = vmatpush1.bf16.msra.mxu0 %v1811
        %1845 = vmatprep.subr.bf16.mxu0 0
        %1846 = vmatpush2.bf16.msra.mxu0 0
        %1847 = vmatprep.subr.bf16.mxu0 0
        %1848 = vmatpush2.bf16.msra.mxu0 0
        %1849 = vmatprep.subr.bf16.mxu0 0
        %1850 = vmatpush2.bf16.msra.mxu0 0
        %1851 = vmatprep.subr.bf16.mxu0 0
        %1852 = vmatpush2.bf16.msra.mxu0 0
        %1853 = vmatprep.subr.bf16.mxu0 0
        %1854 = vmatpush2.bf16.msra.mxu0 0
        %1855 = vmatprep.subr.bf16.mxu0 0
        %1856 = vmatpush2.bf16.msra.mxu0 0
        %1857 = vmatprep.subr.bf16.mxu0 0
        %1858 = vmatpush2.bf16.msra.mxu0 0
        %1859 = vmatprep.subr.bf16.mxu0 0
        %1860 = vmatpush2.bf16.msra.mxu0 0
        %1861 = vmatprep.mubr.bf16.mxu0 0
        %1862 = vmatmul.mubr.bf16.gmra.mxu0 %v1824
        %v1863 = vpop.f32.mrf.mxu0
        %v1864 = vadd.f32 %v1788, %v1863
        %v1865 = vpop.f32.mrf.mxu0
        %v1866 = vpop.f32.mrf.mxu0
        %v1867 = vpop.f32.mrf.mxu0
        %1868 = vdwg.mxu0
        %1869 = vst [vmem:[%s396] sm:$0x1] %v1864
        %s1870 = sand.u32 %s262, 1
        %s1871 = scalar_lea.sflag [#allocation3], %s1870
        %s1872 = sand.u32 %s262, 1
        %s1873 = scalar_lea.vmem [#allocation2], %s1872
        // Predicated region
        $region61: #{convnet_forward.1} parent=59 // pred_check
          %p1874 = pneg %p272
        $region62: #{convnet_forward.1} parent=59 // pred_check_branch
          %1876 = sbr.rel (%p1874) target = $region64
        $region63: #{convnet_forward.1} parent=59 // pred_region
          %s1878 = ssub.s32 16, 16
          %1879 = vsyncadd %s1871, %s1878
          %s1880 = smul.addr %s24, 16
          %s1881 = scalar_lea.hbm %s10, %s1880
          %s1883 = sshll.u32 %s1873, 4
          %s1884 = int_to_ptr.vmem [resolvable:$true] %s1883
          %1886 = dma.vmem_to_hbm [thread:$0]  %s1884, 16, %s1881, %s1871
        $region64: #{convnet_forward.1} parent=59 // pred_fallthru
          _
      $region60: #{convnet_forward.1} parent=5 // pred_fallthru
        _
      %p1887 = scmp.le.s32.totalorder 2, %s19
      // Predicated region
      $region65: #{convnet_forward.1} parent=5 // pred_check
        %p1888 = pneg %p1887
      $region66: #{convnet_forward.1} parent=5 // pred_check_branch
        %1890 = sbr.rel (%p1888) target = $region68
      $region67: #{convnet_forward.1} parent=5 // pred_region
        %s1891 = ssub.s32 %s19, 2
        // Predicated region
        $region69: #{convnet_forward.1} parent=67 // pred_check
          %p1892 = pneg %p278
        $region70: #{convnet_forward.1} parent=67 // pred_check_branch
          %1894 = sbr.rel (%p1892) target = $region72
        $region71: #{convnet_forward.1} parent=67 // pred_region
          %s1895 = sand.u32 %s263, 1
          %s1896 = scalar_lea.sflag [#allocation3], %s1895
          %s1897 = sand.u32 %s263, 1
          %s1898 = scalar_lea.vmem [#allocation2], %s1897
          %1899 = dma.done %s1896, 16
        $region72: #{convnet_forward.1} parent=67 // pred_fallthru
          _
      $region68: #{convnet_forward.1} parent=5 // pred_fallthru
        _
    $region6: #{convnet_forward.1} parent=1 // loop_footer
      %s23 = sadd.s32 1, %s19
    $region7: #{convnet_forward.1} parent=1 // loop_footer_branch
      %18 = sbr.rel target = $region3
    $region8: #{convnet_forward.1} parent=1 // loop_exit
      _
    %1900 = vsyncpa [#allocation3], 1
    %s1901 = scalar_lea.sflag [#allocation3], 1
    %1902 = vsyncpa %s1901, 1

</llo_original>
